<compile_context>
chip_gen: v5e
topology: v5e:2x2
jax: 0.10.0
libtpu: 0.0.40
codegen_flags: <defaults>
</compile_context>

<pallas_src>
import jax
import jax.numpy as jnp
from jax.experimental import pallas as pl
from jax.experimental.pallas import tpu as pltpu


def _round_up(n, m):
    return ((n + m - 1) // m) * m


def _build_kernel(n_rem: int, first_relu: bool):
    """Kernel factory. n_rem = number of hidden [Linear+ReLU] layers remaining
    after the (possibly folded) first Linear; first_relu = whether the first
    matmul is followed by ReLU (True when the fold absorbed hidden layer 0)."""

    def kernel(*refs):
        if n_rem > 0:
            x_ref, w0_ref, b0_ref, wh_ref, bh_ref, wf_ref, bf_ref, out_ref = refs
        else:
            x_ref, w0_ref, b0_ref, wf_ref, bf_ref, out_ref = refs
            wh_ref = bh_ref = None
        mm_dtype = w0_ref.dtype

        # First Linear: x streamed from HBM in f32 and cast to the MXU dtype
        # here in VMEM (no wrapper-side convert). f32 accumulation on the MXU.
        h = jnp.dot(x_ref[...].astype(mm_dtype), w0_ref[...],
                    preferred_element_type=jnp.float32)
        h = h + b0_ref[...]
        if first_relu:
            h = jnp.maximum(h, 0.0)

        # Remaining hidden [Linear + ReLU] layers, statically unrolled.
        for i in range(n_rem):
            h = jnp.dot(h.astype(mm_dtype), wh_ref[i],
                        preferred_element_type=jnp.float32)
            h = jnp.maximum(h + bh_ref[i], 0.0)

        # Final Linear(H -> 1): VPU multiply + lane (XLU) reduction, emitted
        # lane-dense as a (1, block_b) row so the store is a full-lane vst.
        z = jnp.sum(h * wf_ref[...], axis=-1).reshape(1, -1) + bf_ref[0]
        # Numerically stable sigmoid on the EUP: sigmoid(z) = 0.5*(1+tanh(z/2)).
        out_ref[...] = (0.5 * jnp.tanh(0.5 * z) + 0.5).astype(out_ref.dtype)

    return kernel


def shield_forward(x, params, *, block_b=None, compute_dtype=jnp.bfloat16,
                   max_block_b=1024):
    """Fused Shield forward. x: [B, F] float32. Returns [B, 1] float32."""
    w0, b0, wh, bh, wf, bf = params
    B, F = x.shape
    H = w0.shape[1]
    nh = wh.shape[0]

    # Fold the activation-free first Linear into the first hidden Linear
    # (exact in f32):  relu((x@W0 + b0)@Wh0 + bh0) = relu(x@(W0@Wh0) + (b0@Wh0 + bh0)).
    if nh >= 1:
        w0_eff = w0 @ wh[0]
        b0_eff = b0 @ wh[0] + bh[0]
        wh_rem, bh_rem = wh[1:], bh[1:]
        first_relu = True
    else:  # num_layers == 1: no hidden layers, nothing to fold, no activation.
        w0_eff, b0_eff = w0, b0
        wh_rem, bh_rem = wh, bh
        first_relu = False
    n_rem = wh_rem.shape[0]

    # Batch tile: one fat grid step per TensorCore (v5e/v6e: 1, 2-core chips: 2),
    # multiple of 128 (lane-dense output block), capped at max_block_b.
    if block_b is None:
        try:
            cores = max(1, int(getattr(jax.devices()[0], "num_cores", 1)))
        except Exception:
            cores = 1
        block_b = pl.cdiv(B, cores)
    block_b = max(128, min(_round_up(block_b, 128), _round_up(max_block_b, 128)))
    B_pad = _round_up(B, block_b)
    if B_pad != B:  # ragged batch: zero-pad, slice the valid rows at the end.
        x = jnp.pad(x, ((0, B_pad - B), (0, 0)))

    # Only the MXU weight operands are cast to the compute dtype (tiny); x is
    # cast per-tile inside the kernel. Biases, wf, bf, accumulation stay f32.
    w0_c = w0_eff.astype(compute_dtype)
    wh_c = wh_rem.astype(compute_dtype)
    bf_s = bf.reshape(-1).astype(jnp.float32)        # (1,) scalar -> SMEM

    in_specs = [
        pl.BlockSpec((block_b, F), lambda i: (i, 0)),    # x tile (f32)
        pl.BlockSpec((F, H), lambda i: (0, 0)),          # folded W0 (resident)
        pl.BlockSpec((1, H), lambda i: (0, 0)),          # folded b0
    ]
    args = [x, w0_c, b0_eff]
    if n_rem > 0:
        in_specs += [pl.BlockSpec((n_rem, H, H), lambda i: (0, 0, 0)),   # hidden Ws
                     pl.BlockSpec((n_rem, 1, H), lambda i: (0, 0, 0))]   # hidden bs
        args += [wh_c, bh_rem]
    in_specs += [
        pl.BlockSpec((1, H), lambda i: (0, 0)),                   # W_final row (f32)
        pl.BlockSpec(memory_space=pltpu.MemorySpace.SMEM),        # b_final scalar
    ]
    args += [wf, bf_s]

    itemsize = jnp.dtype(compute_dtype).itemsize
    cost = pl.CostEstimate(
        flops=2 * B_pad * (F * H + n_rem * H * H + H),
        transcendentals=B_pad,
        bytes_accessed=(B_pad * F * 4                          # x (f32, no wrapper cast)
                        + (F * H + n_rem * H * H) * itemsize   # MXU weights
                        + (H + n_rem * H + H + 1) * 4          # biases + wf + bf
                        + B_pad * 4),                          # output (f32)
    )

    out = pl.pallas_call(
        _build_kernel(n_rem, first_relu),
        out_shape=jax.ShapeDtypeStruct((1, B_pad), jnp.float32),
        grid_spec=pltpu.PrefetchScalarGridSpec(
            num_scalar_prefetch=0,
            grid=(B_pad // block_b,),
            in_specs=in_specs,
            out_specs=pl.BlockSpec((1, block_b), lambda i: (0, i)),
        ),
        compiler_params=pltpu.CompilerParams(
            dimension_semantics=("parallel",)),
        cost_estimate=cost,
    )(*args)

    return out.reshape(B_pad, 1)[:B]


def init_params(key, input_size, num_layers, hidden_dim):
    """PyTorch-style uniform(-1/sqrt(fan_in), 1/sqrt(fan_in)) init."""
    n_hidden = num_layers - 1
    keys = jax.random.split(key, 6)

    def unif(k, shape, fan_in):
        bound = 1.0 / float(fan_in) ** 0.5
        return jax.random.uniform(k, shape, jnp.float32, -bound, bound)

    w0 = unif(keys[0], (input_size, hidden_dim), input_size)            # [in, out]
    b0 = unif(keys[1], (1, hidden_dim), input_size)
    wh = unif(keys[2], (n_hidden, hidden_dim, hidden_dim), hidden_dim)  # [layer, in, out]
    bh = unif(keys[3], (n_hidden, 1, hidden_dim), hidden_dim)
    wf = unif(keys[4], (1, hidden_dim), hidden_dim)                     # PyTorch [1, H]
    bf = unif(keys[5], (1, 1), hidden_dim)
    return w0, b0, wh, bh, wf, bf


def shield_ref(x, params):
    """Pure-JAX f32 reference mirroring the PyTorch forward layer-by-layer."""
    w0, b0, wh, bh, wf, bf = params
    h = x @ w0 + b0                                    # first Linear, no activation
    for i in range(wh.shape[0]):
        h = jnp.maximum(h @ wh[i] + bh[i], 0.0)        # Linear + ReLU
    return jax.nn.sigmoid(h @ wf.T + bf)               # Linear(1) + Sigmoid


if __name__ == "__main__":
    B = 300            # deliberately ragged: exercises the pad + slice path
    input_size = 32
    hidden_dim = 32
    num_layers = 3     # Linear(32,32), [Linear(32,32)+ReLU]*2, Linear(32,1), Sigmoid

    key = jax.random.PRNGKey(0)
    kx, kp = jax.random.split(key)
    x = jax.random.normal(kx, (B, input_size), dtype=jnp.float32)
    params = init_params(kp, input_size, num_layers, hidden_dim)

    out = shield_forward(x, params, compute_dtype=jnp.bfloat16)
    out = jax.block_until_ready(out)

    ref = shield_ref(x, params)
    assert out.shape == (B, 1), out.shape
    err = float(jnp.max(jnp.abs(out - ref)))
    # bf16 matmuls + the (f32-exact) first-layer fold vs. an f32 layer-by-layer
    # reference: sigmoid compresses the error; 5e-3 gives comfortable headroom
    # while still catching any structural bug.
    assert err < 5e-3, f"max abs err {err}"

    print("KERNEL_OK")
</pallas_src>

<mosaic_0001>
module attributes {stable_mosaic.version = 11 : i64} {
  func.func @kernel(%arg0: i32, %arg1: memref<384x32xf32, #tpu.memory_space<vmem>>, %arg2: memref<32x32xbf16, #tpu.memory_space<vmem>>, %arg3: memref<1x32xf32, #tpu.memory_space<vmem>>, %arg4: memref<1x32x32xbf16, #tpu.memory_space<vmem>>, %arg5: memref<1x1x32xf32, #tpu.memory_space<vmem>>, %arg6: memref<1x32xf32, #tpu.memory_space<vmem>>, %arg7: memref<1xf32, #tpu.memory_space<smem>>, %arg8: memref<1x384xf32, #tpu.memory_space<vmem>>) attributes {dimension_semantics = [#tpu.dimension_semantics<parallel>], iteration_bounds = array<i64: 1>, scalar_prefetch = 0 : i64, scratch_operands = 0 : i64, tpu.core_type = #tpu.core_type<tc>, window_params = [{transform_indices = @transform_0, window_bounds = array<i64: 384, 32>}, {pipeline_mode = #tpu.pipeline_mode<synchronous>, transform_indices = @transform_1, window_bounds = array<i64: 32, 32>}, {pipeline_mode = #tpu.pipeline_mode<synchronous>, transform_indices = @transform_2, window_bounds = array<i64: 1, 32>}, {pipeline_mode = #tpu.pipeline_mode<synchronous>, transform_indices = @transform_3, window_bounds = array<i64: 1, 32, 32>}, {pipeline_mode = #tpu.pipeline_mode<synchronous>, transform_indices = @transform_4, window_bounds = array<i64: 1, 1, 32>}, {pipeline_mode = #tpu.pipeline_mode<synchronous>, transform_indices = @transform_5, window_bounds = array<i64: 1, 32>}, {transform_indices = @transform_6, window_bounds = array<i64: 1>}, {transform_indices = @transform_7, window_bounds = array<i64: 1, 384>}]} {
    %c0 = arith.constant 0 : index
    %c0_0 = arith.constant 0 : index
    %0 = vector.load %arg1[%c0, %c0_0] : memref<384x32xf32, #tpu.memory_space<vmem>>, vector<384x32xf32>
    %1 = arith.truncf %0 : vector<384x32xf32> to vector<384x32xbf16>
    %c0_1 = arith.constant 0 : index
    %c0_2 = arith.constant 0 : index
    %2 = vector.load %arg2[%c0_1, %c0_2] : memref<32x32xbf16, #tpu.memory_space<vmem>>, vector<32x32xbf16>
    %cst = arith.constant dense<0.000000e+00> : vector<384x32xf32>
    %3 = tpu.matmul %1, %2, %cst {dimension_numbers = #tpu.dot_dimension_numbers<[1], [0], [0], [1], [0, 0, 1, 1], [], []>} : vector<384x32xbf16>, vector<32x32xbf16>, vector<384x32xf32> -> vector<384x32xf32>
    %c0_3 = arith.constant 0 : index
    %c0_4 = arith.constant 0 : index
    %4 = vector.load %arg3[%c0_3, %c0_4] : memref<1x32xf32, #tpu.memory_space<vmem>>, vector<1x32xf32>
    %5 = vector.broadcast %4 : vector<1x32xf32> to vector<384x32xf32>
    %6 = arith.addf %3, %5 : vector<384x32xf32>
    %cst_5 = arith.constant 0.000000e+00 : f32
    %7 = vector.broadcast %cst_5 : f32 to vector<384x32xf32>
    %8 = arith.maximumf %6, %7 : vector<384x32xf32>
    %9 = arith.truncf %8 : vector<384x32xf32> to vector<384x32xbf16>
    %c0_6 = arith.constant 0 : index
    %c0_7 = arith.constant 0 : index
    %c0_8 = arith.constant 0 : index
    %10 = vector.load %arg4[%c0_6, %c0_7, %c0_8] : memref<1x32x32xbf16, #tpu.memory_space<vmem>>, vector<1x32x32xbf16>
    %11 = vector.shape_cast %10 : vector<1x32x32xbf16> to vector<32x32xbf16>
    %cst_9 = arith.constant dense<0.000000e+00> : vector<384x32xf32>
    %12 = tpu.matmul %9, %11, %cst_9 {dimension_numbers = #tpu.dot_dimension_numbers<[1], [0], [0], [1], [0, 0, 1, 1], [], []>} : vector<384x32xbf16>, vector<32x32xbf16>, vector<384x32xf32> -> vector<384x32xf32>
    %c0_10 = arith.constant 0 : index
    %c0_11 = arith.constant 0 : index
    %c0_12 = arith.constant 0 : index
    %13 = vector.load %arg5[%c0_10, %c0_11, %c0_12] : memref<1x1x32xf32, #tpu.memory_space<vmem>>, vector<1x1x32xf32>
    %14 = vector.shape_cast %13 : vector<1x1x32xf32> to vector<1x32xf32>
    %15 = vector.broadcast %14 : vector<1x32xf32> to vector<384x32xf32>
    %16 = arith.addf %12, %15 : vector<384x32xf32>
    %cst_13 = arith.constant 0.000000e+00 : f32
    %17 = vector.broadcast %cst_13 : f32 to vector<384x32xf32>
    %18 = arith.maximumf %16, %17 : vector<384x32xf32>
    %c0_14 = arith.constant 0 : index
    %c0_15 = arith.constant 0 : index
    %19 = vector.load %arg6[%c0_14, %c0_15] : memref<1x32xf32, #tpu.memory_space<vmem>>, vector<1x32xf32>
    %20 = vector.broadcast %19 : vector<1x32xf32> to vector<384x32xf32>
    %21 = arith.mulf %18, %20 : vector<384x32xf32>
    %cst_16 = arith.constant dense<0.000000e+00> : vector<384xf32>
    %22 = vector.multi_reduction <add>, %21, %cst_16 [1] : vector<384x32xf32> to vector<384xf32>
    %23 = vector.shape_cast %22 : vector<384xf32> to vector<1x384xf32>
    %c0_17 = arith.constant 0 : index
    %24 = memref.load %arg7[%c0_17] : memref<1xf32, #tpu.memory_space<smem>>
    %25 = vector.broadcast %24 : f32 to vector<1x384xf32>
    %26 = arith.addf %23, %25 : vector<1x384xf32>
    %cst_18 = arith.constant 5.000000e-01 : f32
    %27 = vector.broadcast %cst_18 : f32 to vector<1x384xf32>
    %28 = arith.mulf %27, %26 : vector<1x384xf32>
    %29 = math.tanh %28 : vector<1x384xf32>
    %cst_19 = arith.constant 5.000000e-01 : f32
    %30 = vector.broadcast %cst_19 : f32 to vector<1x384xf32>
    %31 = arith.mulf %30, %29 : vector<1x384xf32>
    %cst_20 = arith.constant 5.000000e-01 : f32
    %32 = vector.broadcast %cst_20 : f32 to vector<1x384xf32>
    %33 = arith.addf %31, %32 : vector<1x384xf32>
    %c0_21 = arith.constant 0 : index
    %c0_22 = arith.constant 0 : index
    %34 = vector.load %arg8[%c0_21, %c0_22] : memref<1x384xf32, #tpu.memory_space<vmem>>, vector<1x384xf32>
    tpu.vector_store %arg8[%c0_21, %c0_22], %33 {strides = array<i32>} : memref<1x384xf32, #tpu.memory_space<vmem>>, vector<1x384xf32>,
    return
  }
  func.func @transform_0(%arg0: i32) -> (i32, i32) {
    %c0_i32 = arith.constant 0 : i32
    %c0_i32_0 = arith.constant 0 : i32
    return %arg0, %c0_i32 : i32, i32
  }
  func.func @transform_1(%arg0: i32) -> (i32, i32) {
    %c0_i32 = arith.constant 0 : i32
    %c0_i32_0 = arith.constant 0 : i32
    %c0_i32_1 = arith.constant 0 : i32
    return %c0_i32, %c0_i32_0 : i32, i32
  }
  func.func @transform_2(%arg0: i32) -> (i32, i32) {
    %c0_i32 = arith.constant 0 : i32
    %c0_i32_0 = arith.constant 0 : i32
    %c0_i32_1 = arith.constant 0 : i32
    return %c0_i32, %c0_i32_0 : i32, i32
  }
  func.func @transform_3(%arg0: i32) -> (i32, i32, i32) {
    %c0_i32 = arith.constant 0 : i32
    %c0_i32_0 = arith.constant 0 : i32
    %c0_i32_1 = arith.constant 0 : i32
    %c0_i32_2 = arith.constant 0 : i32
    return %c0_i32, %c0_i32_0, %c0_i32_1 : i32, i32, i32
  }
  func.func @transform_4(%arg0: i32) -> (i32, i32, i32) {
    %c0_i32 = arith.constant 0 : i32
    %c0_i32_0 = arith.constant 0 : i32
    %c0_i32_1 = arith.constant 0 : i32
    %c0_i32_2 = arith.constant 0 : i32
    return %c0_i32, %c0_i32_0, %c0_i32_1 : i32, i32, i32
  }
  func.func @transform_5(%arg0: i32) -> (i32, i32) {
    %c0_i32 = arith.constant 0 : i32
    %c0_i32_0 = arith.constant 0 : i32
    %c0_i32_1 = arith.constant 0 : i32
    return %c0_i32, %c0_i32_0 : i32, i32
  }
  func.func @transform_6(%arg0: i32) -> i32 {
    %c0_i32 = arith.constant 0 : i32
    %c0_i32_0 = arith.constant 0 : i32
    return %c0_i32 : i32
  }
  func.func @transform_7(%arg0: i32) -> (i32, i32) {
    %c0_i32 = arith.constant 0 : i32
    %c0_i32_0 = arith.constant 0 : i32
    return %c0_i32, %arg0 : i32, i32
  }
}

</mosaic_0001>

<llo_original>
// kernel: tpu_custom_call.1
$region0: #{tpu_custom_call.1}
  #allocation0 [shape = 'u32[]', space=smem, size = 0x4, offset = 0x4, fixed_abs, tag = 'smem constant byte address 0x4 - core index']
  #allocation1 [shape = 'u32[72,128]{1,0:T(1,128)}', space=vmem, size = 0x9000, scoped, tag = 'internal scratch']
  #allocation2 [shape = 'f32[1]{0:T(128)S(6)}', space=smem, size = 0x200, scoped, tag = 'scoped memory for tpu_custom_call.1']
  %s0 = inlined_call_operand.vmem [shape: f32[384,32], index: 0, kind: input, shape index: {}]
  %s1 = inlined_call_operand.vmem [shape: bf16[32,32], index: 1, kind: input, shape index: {}]
  %s2 = inlined_call_operand.vmem [shape: f32[1,32], index: 2, kind: input, shape index: {}]
  %s3 = inlined_call_operand.vmem [shape: bf16[1,32,32], index: 3, kind: input, shape index: {}]
  %s4 = inlined_call_operand.vmem [shape: f32[1,1,32], index: 4, kind: input, shape index: {}]
  %s5 = inlined_call_operand.vmem [shape: f32[1,32], index: 5, kind: input, shape index: {}]
  %s6 = inlined_call_operand.<no memory space> [shape: f32[1], index: 6, kind: input, shape index: {}]
  %s7 = inlined_call_operand.hbm [shape: f32[1,384], index: 7, kind: output, shape index: {}]
  %s8 = sld [smem:[#allocation0]]
  $region38: #{tpu_custom_call.1} parent=0
    _
  %s10 = ssub.s32 1, %s8
  %s11 = scalar_select 0, %s10, %s8
  %12 = sst [smem:[#allocation2]] %s6
  $region1: #{tpu_custom_call.1} parent=0
    #allocation3 [shape = 'u8[1536]{0}', space=vmem, size = 0x800, scoped, tag = 'output window, operand 0, single buffered']
    #allocation4 [shape = 's32[1]{0}', space=sflag, size = 0x4, scoped, tag = 'scoped memory for tpu_custom_call.1']
    %13 = vsyncpa [#allocation4], 0
    // Predicated region
    $region2: #{tpu_custom_call.1} parent=1 // pred_check
      _
    $region3: #{tpu_custom_call.1} parent=1 // pred_check_branch
      %15 = sbr.rel (0) target = $region5
    $region4: #{tpu_custom_call.1} parent=1 // pred_region
      _
    $region5: #{tpu_custom_call.1} parent=1 // pred_fallthru
      _
    // Predicated region
    $region6: #{tpu_custom_call.1} parent=1 // pred_check
      _
    $region7: #{tpu_custom_call.1} parent=1 // pred_check_branch
      %17 = sbr.rel (0) target = $region9
    $region8: #{tpu_custom_call.1} parent=1 // pred_region
      _
    $region9: #{tpu_custom_call.1} parent=1 // pred_fallthru
      _
    // Predicated region
    $region10: #{tpu_custom_call.1} parent=1 // pred_check
      _
    $region11: #{tpu_custom_call.1} parent=1 // pred_check_branch
      %19 = sbr.rel (0) target = $region13
    $region12: #{tpu_custom_call.1} parent=1 // pred_region
      _
    $region13: #{tpu_custom_call.1} parent=1 // pred_fallthru
      _
    // Predicated region
    $region14: #{tpu_custom_call.1} parent=1 // pred_check
      _
    $region15: #{tpu_custom_call.1} parent=1 // pred_check_branch
      %21 = sbr.rel (0) target = $region17
    $region16: #{tpu_custom_call.1} parent=1 // pred_region
      _
    $region17: #{tpu_custom_call.1} parent=1 // pred_fallthru
      _
    // Predicated region
    $region18: #{tpu_custom_call.1} parent=1 // pred_check
      _
    $region19: #{tpu_custom_call.1} parent=1 // pred_check_branch
      %23 = sbr.rel (0) target = $region21
    $region20: #{tpu_custom_call.1} parent=1 // pred_region
      _
    $region21: #{tpu_custom_call.1} parent=1 // pred_fallthru
      _
    // Predicated region
    $region22: #{tpu_custom_call.1} parent=1 // pred_check
      _
    $region23: #{tpu_custom_call.1} parent=1 // pred_check_branch
      %25 = sbr.rel (0) target = $region25
    $region24: #{tpu_custom_call.1} parent=1 // pred_region
      _
    $region25: #{tpu_custom_call.1} parent=1 // pred_fallthru
      _
    // Predicated region
    $region26: #{tpu_custom_call.1} parent=1 // pred_check
      _
    $region27: #{tpu_custom_call.1} parent=1 // pred_check_branch
      %27 = sbr.rel (0) target = $region29
    $region28: #{tpu_custom_call.1} parent=1 // pred_region
      _
    $region29: #{tpu_custom_call.1} parent=1 // pred_fallthru
      _
    %v29 = vld [vmem:[%s0] sm:$0xff]
    %v30 = vld [vmem:[%s0 + $0x8] sm:$0xff]
    %v31 = vld [vmem:[%s0 + $0x10] sm:$0xff]
    %v32 = vld [vmem:[%s0 + $0x18] sm:$0xff]
    %v33 = vld [vmem:[%s0 + $0x20] sm:$0xff]
    %v34 = vld [vmem:[%s0 + $0x28] sm:$0xff]
    %v35 = vld [vmem:[%s0 + $0x30] sm:$0xff]
    %v36 = vld [vmem:[%s0 + $0x38] sm:$0xff]
    %v37 = vld [vmem:[%s0 + $0x40] sm:$0xff]
    %v38 = vld [vmem:[%s0 + $0x48] sm:$0xff]
    %v39 = vld [vmem:[%s0 + $0x50] sm:$0xff]
    %v40 = vld [vmem:[%s0 + $0x58] sm:$0xff]
    %v41 = vld [vmem:[%s0 + $0x60] sm:$0xff]
    %v42 = vld [vmem:[%s0 + $0x68] sm:$0xff]
    %v43 = vld [vmem:[%s0 + $0x70] sm:$0xff]
    %v44 = vld [vmem:[%s0 + $0x78] sm:$0xff]
    %v45 = vld [vmem:[%s0 + $0x80] sm:$0xff]
    %v46 = vld [vmem:[%s0 + $0x88] sm:$0xff]
    %v47 = vld [vmem:[%s0 + $0x90] sm:$0xff]
    %v48 = vld [vmem:[%s0 + $0x98] sm:$0xff]
    %v49 = vld [vmem:[%s0 + $0xa0] sm:$0xff]
    %v50 = vld [vmem:[%s0 + $0xa8] sm:$0xff]
    %v51 = vld [vmem:[%s0 + $0xb0] sm:$0xff]
    %v52 = vld [vmem:[%s0 + $0xb8] sm:$0xff]
    %v53 = vld [vmem:[%s0 + $0xc0] sm:$0xff]
    %v54 = vld [vmem:[%s0 + $0xc8] sm:$0xff]
    %v55 = vld [vmem:[%s0 + $0xd0] sm:$0xff]
    %v56 = vld [vmem:[%s0 + $0xd8] sm:$0xff]
    %v57 = vld [vmem:[%s0 + $0xe0] sm:$0xff]
    %v58 = vld [vmem:[%s0 + $0xe8] sm:$0xff]
    %v59 = vld [vmem:[%s0 + $0xf0] sm:$0xff]
    %v60 = vld [vmem:[%s0 + $0xf8] sm:$0xff]
    %v61 = vld [vmem:[%s0 + $0x100] sm:$0xff]
    %v62 = vld [vmem:[%s0 + $0x108] sm:$0xff]
    %v63 = vld [vmem:[%s0 + $0x110] sm:$0xff]
    %v64 = vld [vmem:[%s0 + $0x118] sm:$0xff]
    %v65 = vld [vmem:[%s0 + $0x120] sm:$0xff]
    %v66 = vld [vmem:[%s0 + $0x128] sm:$0xff]
    %v67 = vld [vmem:[%s0 + $0x130] sm:$0xff]
    %v68 = vld [vmem:[%s0 + $0x138] sm:$0xff]
    %v69 = vld [vmem:[%s0 + $0x140] sm:$0xff]
    %v70 = vld [vmem:[%s0 + $0x148] sm:$0xff]
    %v71 = vld [vmem:[%s0 + $0x150] sm:$0xff]
    %v72 = vld [vmem:[%s0 + $0x158] sm:$0xff]
    %v73 = vld [vmem:[%s0 + $0x160] sm:$0xff]
    %v74 = vld [vmem:[%s0 + $0x168] sm:$0xff]
    %v75 = vld [vmem:[%s0 + $0x170] sm:$0xff]
    %v76 = vld [vmem:[%s0 + $0x178] sm:$0xff]
    %v77 = vpack.c.bf16 %v30, %v29
    %v78 = vpack.c.bf16 %v32, %v31
    %v79 = vpack.c.bf16 %v34, %v33
    %v80 = vpack.c.bf16 %v36, %v35
    %v81 = vpack.c.bf16 %v38, %v37
    %v82 = vpack.c.bf16 %v40, %v39
    %v83 = vpack.c.bf16 %v42, %v41
    %v84 = vpack.c.bf16 %v44, %v43
    %v85 = vpack.c.bf16 %v46, %v45
    %v86 = vpack.c.bf16 %v48, %v47
    %v87 = vpack.c.bf16 %v50, %v49
    %v88 = vpack.c.bf16 %v52, %v51
    %v89 = vpack.c.bf16 %v54, %v53
    %v90 = vpack.c.bf16 %v56, %v55
    %v91 = vpack.c.bf16 %v58, %v57
    %v92 = vpack.c.bf16 %v60, %v59
    %v93 = vpack.c.bf16 %v62, %v61
    %v94 = vpack.c.bf16 %v64, %v63
    %v95 = vpack.c.bf16 %v66, %v65
    %v96 = vpack.c.bf16 %v68, %v67
    %v97 = vpack.c.bf16 %v70, %v69
    %v98 = vpack.c.bf16 %v72, %v71
    %v99 = vpack.c.bf16 %v74, %v73
    %v100 = vpack.c.bf16 %v76, %v75
    %v101 = vld [vmem:[%s1] sm:$0xf]
    %v102 = vld [vmem:[%s1 + $0x4] sm:$0xf]
    %v103 = vld [vmem:[%s1 + $0x8] sm:$0xf]
    %v104 = vld [vmem:[%s1 + $0xc] sm:$0xf]
    %v105 = vld [vmem:[%s2] sm:$0x1]
    %v107 = vperm.slane %v105, 0
    %v113 = vunpack.c.l.b16 %v101
    %v114 = vunpack.c.l.b16 %v102
    %v115 = vunpack.c.l.b16 %v103
    %v116 = vunpack.c.l.b16 %v104
    %v117 = vpack.c.b16 %v114, %v113
    %v118 = vpack.c.b16 %v116, %v115
    %vm121 = vcmask 261120
    %v123 = vsel %vm121, %v77, 0
    %v126 = vsel %vm121, %v78, 0
    %v129 = vsel %vm121, %v79, 0
    %v132 = vsel %vm121, %v80, 0
    %v135 = vsel %vm121, %v81, 0
    %v138 = vsel %vm121, %v82, 0
    %v141 = vsel %vm121, %v83, 0
    %v144 = vsel %vm121, %v84, 0
    %v147 = vsel %vm121, %v85, 0
    %v150 = vsel %vm121, %v86, 0
    %v153 = vsel %vm121, %v87, 0
    %v156 = vsel %vm121, %v88, 0
    %v159 = vsel %vm121, %v89, 0
    %v162 = vsel %vm121, %v90, 0
    %v165 = vsel %vm121, %v91, 0
    %v168 = vsel %vm121, %v92, 0
    %v171 = vsel %vm121, %v93, 0
    %v174 = vsel %vm121, %v94, 0
    %v177 = vsel %vm121, %v95, 0
    %v180 = vsel %vm121, %v96, 0
    %v183 = vsel %vm121, %v97, 0
    %v186 = vsel %vm121, %v98, 0
    %v189 = vsel %vm121, %v99, 0
    %v192 = vsel %vm121, %v100, 0
    %194 = vmatpush.bf16.msra.mxu0 0
    %195 = vmatpush.bf16.msra.mxu0 0
    %196 = vmatpush.bf16.msra.mxu0 0
    %197 = vmatpush.bf16.msra.mxu0 0
    %198 = vmatpush.bf16.msra.mxu0 0
    %199 = vmatpush.bf16.msra.mxu0 0
    %200 = vmatpush.bf16.msra.mxu0 %v118
    %201 = vmatpush.bf16.msra.mxu0 %v117
    %202 = vmatmul.bf16.gmra.mxu0 %v123
    %v203 = vpop.f32.mrf.mxu0
    %v204 = vadd.f32 %v107, %v203
    %v205 = vpop.f32.mrf.mxu0
    %v206 = vadd.f32 %v107, %v205
    %207 = vmatmul.bf16.gmra.mxu0 %v126
    %v208 = vpop.f32.mrf.mxu0
    %v209 = vadd.f32 %v107, %v208
    %v210 = vpop.f32.mrf.mxu0
    %v211 = vadd.f32 %v107, %v210
    %212 = vmatmul.bf16.gmra.mxu0 %v129
    %v213 = vpop.f32.mrf.mxu0
    %v214 = vadd.f32 %v107, %v213
    %v215 = vpop.f32.mrf.mxu0
    %v216 = vadd.f32 %v107, %v215
    %217 = vmatmul.bf16.gmra.mxu0 %v132
    %v218 = vpop.f32.mrf.mxu0
    %v219 = vadd.f32 %v107, %v218
    %v220 = vpop.f32.mrf.mxu0
    %v221 = vadd.f32 %v107, %v220
    %222 = vmatmul.bf16.gmra.mxu0 %v135
    %v223 = vpop.f32.mrf.mxu0
    %v224 = vadd.f32 %v107, %v223
    %v225 = vpop.f32.mrf.mxu0
    %v226 = vadd.f32 %v107, %v225
    %227 = vmatmul.bf16.gmra.mxu0 %v138
    %v228 = vpop.f32.mrf.mxu0
    %v229 = vadd.f32 %v107, %v228
    %v230 = vpop.f32.mrf.mxu0
    %v231 = vadd.f32 %v107, %v230
    %232 = vmatmul.bf16.gmra.mxu0 %v141
    %v233 = vpop.f32.mrf.mxu0
    %v234 = vadd.f32 %v107, %v233
    %v235 = vpop.f32.mrf.mxu0
    %v236 = vadd.f32 %v107, %v235
    %237 = vmatmul.bf16.gmra.mxu0 %v144
    %v238 = vpop.f32.mrf.mxu0
    %v239 = vadd.f32 %v107, %v238
    %v240 = vpop.f32.mrf.mxu0
    %v241 = vadd.f32 %v107, %v240
    %242 = vmatmul.bf16.gmra.mxu0 %v147
    %v243 = vpop.f32.mrf.mxu0
    %v244 = vadd.f32 %v107, %v243
    %v245 = vpop.f32.mrf.mxu0
    %v246 = vadd.f32 %v107, %v245
    %247 = vmatmul.bf16.gmra.mxu0 %v150
    %v248 = vpop.f32.mrf.mxu0
    %v249 = vadd.f32 %v107, %v248
    %v250 = vpop.f32.mrf.mxu0
    %v251 = vadd.f32 %v107, %v250
    %252 = vmatmul.bf16.gmra.mxu0 %v153
    %v253 = vpop.f32.mrf.mxu0
    %v254 = vadd.f32 %v107, %v253
    %v255 = vpop.f32.mrf.mxu0
    %v256 = vadd.f32 %v107, %v255
    %257 = vmatmul.bf16.gmra.mxu0 %v156
    %v258 = vpop.f32.mrf.mxu0
    %v259 = vadd.f32 %v107, %v258
    %v260 = vpop.f32.mrf.mxu0
    %v261 = vadd.f32 %v107, %v260
    %262 = vmatmul.bf16.gmra.mxu0 %v159
    %v263 = vpop.f32.mrf.mxu0
    %v264 = vadd.f32 %v107, %v263
    %v265 = vpop.f32.mrf.mxu0
    %v266 = vadd.f32 %v107, %v265
    %267 = vmatmul.bf16.gmra.mxu0 %v162
    %v268 = vpop.f32.mrf.mxu0
    %v269 = vadd.f32 %v107, %v268
    %v270 = vpop.f32.mrf.mxu0
    %v271 = vadd.f32 %v107, %v270
    %272 = vmatmul.bf16.gmra.mxu0 %v165
    %v273 = vpop.f32.mrf.mxu0
    %v274 = vadd.f32 %v107, %v273
    %v275 = vpop.f32.mrf.mxu0
    %v276 = vadd.f32 %v107, %v275
    %277 = vmatmul.bf16.gmra.mxu0 %v168
    %v278 = vpop.f32.mrf.mxu0
    %v279 = vadd.f32 %v107, %v278
    %v280 = vpop.f32.mrf.mxu0
    %v281 = vadd.f32 %v107, %v280
    %282 = vmatmul.bf16.gmra.mxu0 %v171
    %v283 = vpop.f32.mrf.mxu0
    %v284 = vadd.f32 %v107, %v283
    %v285 = vpop.f32.mrf.mxu0
    %v286 = vadd.f32 %v107, %v285
    %287 = vmatmul.bf16.gmra.mxu0 %v174
    %v288 = vpop.f32.mrf.mxu0
    %v289 = vadd.f32 %v107, %v288
    %v290 = vpop.f32.mrf.mxu0
    %v291 = vadd.f32 %v107, %v290
    %292 = vmatmul.bf16.gmra.mxu0 %v177
    %v293 = vpop.f32.mrf.mxu0
    %v294 = vadd.f32 %v107, %v293
    %v295 = vpop.f32.mrf.mxu0
    %v296 = vadd.f32 %v107, %v295
    %297 = vmatmul.bf16.gmra.mxu0 %v180
    %v298 = vpop.f32.mrf.mxu0
    %v299 = vadd.f32 %v107, %v298
    %v300 = vpop.f32.mrf.mxu0
    %v301 = vadd.f32 %v107, %v300
    %302 = vmatmul.bf16.gmra.mxu0 %v183
    %v303 = vpop.f32.mrf.mxu0
    %v304 = vadd.f32 %v107, %v303
    %v305 = vpop.f32.mrf.mxu0
    %v306 = vadd.f32 %v107, %v305
    %307 = vmatmul.bf16.gmra.mxu0 %v186
    %v308 = vpop.f32.mrf.mxu0
    %v309 = vadd.f32 %v107, %v308
    %v310 = vpop.f32.mrf.mxu0
    %v311 = vadd.f32 %v107, %v310
    %312 = vmatmul.bf16.gmra.mxu0 %v189
    %v313 = vpop.f32.mrf.mxu0
    %v314 = vadd.f32 %v107, %v313
    %v315 = vpop.f32.mrf.mxu0
    %v316 = vadd.f32 %v107, %v315
    %317 = vmatmul.bf16.gmra.mxu0 %v192
    %v318 = vpop.f32.mrf.mxu0
    %v319 = vadd.f32 %v107, %v318
    %v320 = vpop.f32.mrf.mxu0
    %v321 = vadd.f32 %v107, %v320
    %322 = vdwg.mxu0
    %v323 = vmax.f32 %v204, 0.0
    %v324 = vmax.f32 %v206, 0.0
    %v325 = vmax.f32 %v209, 0.0
    %v326 = vmax.f32 %v211, 0.0
    %v327 = vmax.f32 %v214, 0.0
    %v328 = vmax.f32 %v216, 0.0
    %v329 = vmax.f32 %v219, 0.0
    %v330 = vmax.f32 %v221, 0.0
    %v331 = vmax.f32 %v224, 0.0
    %v332 = vmax.f32 %v226, 0.0
    %v333 = vmax.f32 %v229, 0.0
    %v334 = vmax.f32 %v231, 0.0
    %v335 = vmax.f32 %v234, 0.0
    %v336 = vmax.f32 %v236, 0.0
    %v337 = vmax.f32 %v239, 0.0
    %v338 = vmax.f32 %v241, 0.0
    %v339 = vmax.f32 %v244, 0.0
    %v340 = vmax.f32 %v246, 0.0
    %v341 = vmax.f32 %v249, 0.0
    %v342 = vmax.f32 %v251, 0.0
    %v343 = vmax.f32 %v254, 0.0
    %v344 = vmax.f32 %v256, 0.0
    %v345 = vmax.f32 %v259, 0.0
    %v346 = vmax.f32 %v261, 0.0
    %v347 = vmax.f32 %v264, 0.0
    %v348 = vmax.f32 %v266, 0.0
    %v349 = vmax.f32 %v269, 0.0
    %v350 = vmax.f32 %v271, 0.0
    %v351 = vmax.f32 %v274, 0.0
    %v352 = vmax.f32 %v276, 0.0
    %v353 = vmax.f32 %v279, 0.0
    %v354 = vmax.f32 %v281, 0.0
    %v355 = vmax.f32 %v284, 0.0
    %v356 = vmax.f32 %v286, 0.0
    %v357 = vmax.f32 %v289, 0.0
    %v358 = vmax.f32 %v291, 0.0
    %v359 = vmax.f32 %v294, 0.0
    %v360 = vmax.f32 %v296, 0.0
    %v361 = vmax.f32 %v299, 0.0
    %v362 = vmax.f32 %v301, 0.0
    %v363 = vmax.f32 %v304, 0.0
    %v364 = vmax.f32 %v306, 0.0
    %v365 = vmax.f32 %v309, 0.0
    %v366 = vmax.f32 %v311, 0.0
    %v367 = vmax.f32 %v314, 0.0
    %v368 = vmax.f32 %v316, 0.0
    %v369 = vmax.f32 %v319, 0.0
    %v370 = vmax.f32 %v321, 0.0
    %v371 = vpack.c.bf16 %v324, %v323
    %v372 = vpack.c.bf16 %v326, %v325
    %v373 = vpack.c.bf16 %v328, %v327
    %v374 = vpack.c.bf16 %v330, %v329
    %v375 = vpack.c.bf16 %v332, %v331
    %v376 = vpack.c.bf16 %v334, %v333
    %v377 = vpack.c.bf16 %v336, %v335
    %v378 = vpack.c.bf16 %v338, %v337
    %v379 = vpack.c.bf16 %v340, %v339
    %v380 = vpack.c.bf16 %v342, %v341
    %v381 = vpack.c.bf16 %v344, %v343
    %v382 = vpack.c.bf16 %v346, %v345
    %v383 = vpack.c.bf16 %v348, %v347
    %v384 = vpack.c.bf16 %v350, %v349
    %v385 = vpack.c.bf16 %v352, %v351
    %v386 = vpack.c.bf16 %v354, %v353
    %v387 = vpack.c.bf16 %v356, %v355
    %v388 = vpack.c.bf16 %v358, %v357
    %v389 = vpack.c.bf16 %v360, %v359
    %v390 = vpack.c.bf16 %v362, %v361
    %v391 = vpack.c.bf16 %v364, %v363
    %v392 = vpack.c.bf16 %v366, %v365
    %v393 = vpack.c.bf16 %v368, %v367
    %v394 = vpack.c.bf16 %v370, %v369
    %v395 = vld [vmem:[%s3] sm:$0xf]
    %v396 = vld [vmem:[%s3 + $0x4] sm:$0xf]
    %v397 = vld [vmem:[%s3 + $0x8] sm:$0xf]
    %v398 = vld [vmem:[%s3 + $0xc] sm:$0xf]
    %v399 = vld [vmem:[%s4] sm:$0x1]
    %v401 = vperm.slane %v399, 0
    %v407 = vunpack.c.l.b16 %v395
    %v408 = vunpack.c.l.b16 %v396
    %v409 = vunpack.c.l.b16 %v397
    %v410 = vunpack.c.l.b16 %v398
    %v411 = vpack.c.b16 %v408, %v407
    %v412 = vpack.c.b16 %v410, %v409
    %v416 = vsel %vm121, %v371, 0
    %v419 = vsel %vm121, %v372, 0
    %v422 = vsel %vm121, %v373, 0
    %v425 = vsel %vm121, %v374, 0
    %v428 = vsel %vm121, %v375, 0
    %v431 = vsel %vm121, %v376, 0
    %v434 = vsel %vm121, %v377, 0
    %v437 = vsel %vm121, %v378, 0
    %v440 = vsel %vm121, %v379, 0
    %v443 = vsel %vm121, %v380, 0
    %v446 = vsel %vm121, %v381, 0
    %v449 = vsel %vm121, %v382, 0
    %v452 = vsel %vm121, %v383, 0
    %v455 = vsel %vm121, %v384, 0
    %v458 = vsel %vm121, %v385, 0
    %v461 = vsel %vm121, %v386, 0
    %v464 = vsel %vm121, %v387, 0
    %v467 = vsel %vm121, %v388, 0
    %v470 = vsel %vm121, %v389, 0
    %v473 = vsel %vm121, %v390, 0
    %v476 = vsel %vm121, %v391, 0
    %v479 = vsel %vm121, %v392, 0
    %v482 = vsel %vm121, %v393, 0
    %v485 = vsel %vm121, %v394, 0
    %487 = vmatpush.bf16.msra.mxu0 0
    %488 = vmatpush.bf16.msra.mxu0 0
    %489 = vmatpush.bf16.msra.mxu0 0
    %490 = vmatpush.bf16.msra.mxu0 0
    %491 = vmatpush.bf16.msra.mxu0 0
    %492 = vmatpush.bf16.msra.mxu0 0
    %493 = vmatpush.bf16.msra.mxu0 %v412
    %494 = vmatpush.bf16.msra.mxu0 %v411
    %495 = vmatmul.bf16.gmra.mxu0 %v416
    %v496 = vpop.f32.mrf.mxu0
    %v497 = vadd.f32 %v401, %v496
    %v498 = vpop.f32.mrf.mxu0
    %v499 = vadd.f32 %v401, %v498
    %500 = vmatmul.bf16.gmra.mxu0 %v419
    %v501 = vpop.f32.mrf.mxu0
    %v502 = vadd.f32 %v401, %v501
    %v503 = vpop.f32.mrf.mxu0
    %v504 = vadd.f32 %v401, %v503
    %505 = vmatmul.bf16.gmra.mxu0 %v422
    %v506 = vpop.f32.mrf.mxu0
    %v507 = vadd.f32 %v401, %v506
    %v508 = vpop.f32.mrf.mxu0
    %v509 = vadd.f32 %v401, %v508
    %510 = vmatmul.bf16.gmra.mxu0 %v425
    %v511 = vpop.f32.mrf.mxu0
    %v512 = vadd.f32 %v401, %v511
    %v513 = vpop.f32.mrf.mxu0
    %v514 = vadd.f32 %v401, %v513
    %515 = vmatmul.bf16.gmra.mxu0 %v428
    %v516 = vpop.f32.mrf.mxu0
    %v517 = vadd.f32 %v401, %v516
    %v518 = vpop.f32.mrf.mxu0
    %v519 = vadd.f32 %v401, %v518
    %520 = vmatmul.bf16.gmra.mxu0 %v431
    %v521 = vpop.f32.mrf.mxu0
    %v522 = vadd.f32 %v401, %v521
    %v523 = vpop.f32.mrf.mxu0
    %v524 = vadd.f32 %v401, %v523
    %525 = vmatmul.bf16.gmra.mxu0 %v434
    %v526 = vpop.f32.mrf.mxu0
    %v527 = vadd.f32 %v401, %v526
    %v528 = vpop.f32.mrf.mxu0
    %v529 = vadd.f32 %v401, %v528
    %530 = vmatmul.bf16.gmra.mxu0 %v437
    %v531 = vpop.f32.mrf.mxu0
    %v532 = vadd.f32 %v401, %v531
    %v533 = vpop.f32.mrf.mxu0
    %v534 = vadd.f32 %v401, %v533
    %535 = vmatmul.bf16.gmra.mxu0 %v440
    %v536 = vpop.f32.mrf.mxu0
    %v537 = vadd.f32 %v401, %v536
    %v538 = vpop.f32.mrf.mxu0
    %v539 = vadd.f32 %v401, %v538
    %540 = vmatmul.bf16.gmra.mxu0 %v443
    %v541 = vpop.f32.mrf.mxu0
    %v542 = vadd.f32 %v401, %v541
    %v543 = vpop.f32.mrf.mxu0
    %v544 = vadd.f32 %v401, %v543
    %545 = vmatmul.bf16.gmra.mxu0 %v446
    %v546 = vpop.f32.mrf.mxu0
    %v547 = vadd.f32 %v401, %v546
    %v548 = vpop.f32.mrf.mxu0
    %v549 = vadd.f32 %v401, %v548
    %550 = vmatmul.bf16.gmra.mxu0 %v449
    %v551 = vpop.f32.mrf.mxu0
    %v552 = vadd.f32 %v401, %v551
    %v553 = vpop.f32.mrf.mxu0
    %v554 = vadd.f32 %v401, %v553
    %555 = vmatmul.bf16.gmra.mxu0 %v452
    %v556 = vpop.f32.mrf.mxu0
    %v557 = vadd.f32 %v401, %v556
    %v558 = vpop.f32.mrf.mxu0
    %v559 = vadd.f32 %v401, %v558
    %560 = vmatmul.bf16.gmra.mxu0 %v455
    %v561 = vpop.f32.mrf.mxu0
    %v562 = vadd.f32 %v401, %v561
    %v563 = vpop.f32.mrf.mxu0
    %v564 = vadd.f32 %v401, %v563
    %565 = vmatmul.bf16.gmra.mxu0 %v458
    %v566 = vpop.f32.mrf.mxu0
    %v567 = vadd.f32 %v401, %v566
    %v568 = vpop.f32.mrf.mxu0
    %v569 = vadd.f32 %v401, %v568
    %570 = vmatmul.bf16.gmra.mxu0 %v461
    %v571 = vpop.f32.mrf.mxu0
    %v572 = vadd.f32 %v401, %v571
    %v573 = vpop.f32.mrf.mxu0
    %v574 = vadd.f32 %v401, %v573
    %575 = vmatmul.bf16.gmra.mxu0 %v464
    %v576 = vpop.f32.mrf.mxu0
    %v577 = vadd.f32 %v401, %v576
    %v578 = vpop.f32.mrf.mxu0
    %v579 = vadd.f32 %v401, %v578
    %580 = vmatmul.bf16.gmra.mxu0 %v467
    %v581 = vpop.f32.mrf.mxu0
    %v582 = vadd.f32 %v401, %v581
    %v583 = vpop.f32.mrf.mxu0
    %v584 = vadd.f32 %v401, %v583
    %585 = vmatmul.bf16.gmra.mxu0 %v470
    %v586 = vpop.f32.mrf.mxu0
    %v587 = vadd.f32 %v401, %v586
    %v588 = vpop.f32.mrf.mxu0
    %v589 = vadd.f32 %v401, %v588
    %590 = vmatmul.bf16.gmra.mxu0 %v473
    %v591 = vpop.f32.mrf.mxu0
    %v592 = vadd.f32 %v401, %v591
    %v593 = vpop.f32.mrf.mxu0
    %v594 = vadd.f32 %v401, %v593
    %595 = vmatmul.bf16.gmra.mxu0 %v476
    %v596 = vpop.f32.mrf.mxu0
    %v597 = vadd.f32 %v401, %v596
    %v598 = vpop.f32.mrf.mxu0
    %v599 = vadd.f32 %v401, %v598
    %600 = vmatmul.bf16.gmra.mxu0 %v479
    %v601 = vpop.f32.mrf.mxu0
    %v602 = vadd.f32 %v401, %v601
    %v603 = vpop.f32.mrf.mxu0
    %v604 = vadd.f32 %v401, %v603
    %605 = vmatmul.bf16.gmra.mxu0 %v482
    %v606 = vpop.f32.mrf.mxu0
    %v607 = vadd.f32 %v401, %v606
    %v608 = vpop.f32.mrf.mxu0
    %v609 = vadd.f32 %v401, %v608
    %610 = vmatmul.bf16.gmra.mxu0 %v485
    %v611 = vpop.f32.mrf.mxu0
    %v612 = vadd.f32 %v401, %v611
    %v613 = vpop.f32.mrf.mxu0
    %v614 = vadd.f32 %v401, %v613
    %615 = vdwg.mxu0
    %v616 = vmax.f32 %v497, 0.0
    %v617 = vmax.f32 %v499, 0.0
    %v618 = vmax.f32 %v502, 0.0
    %v619 = vmax.f32 %v504, 0.0
    %v620 = vmax.f32 %v507, 0.0
    %v621 = vmax.f32 %v509, 0.0
    %v622 = vmax.f32 %v512, 0.0
    %v623 = vmax.f32 %v514, 0.0
    %v624 = vmax.f32 %v517, 0.0
    %v625 = vmax.f32 %v519, 0.0
    %v626 = vmax.f32 %v522, 0.0
    %v627 = vmax.f32 %v524, 0.0
    %v628 = vmax.f32 %v527, 0.0
    %v629 = vmax.f32 %v529, 0.0
    %v630 = vmax.f32 %v532, 0.0
    %v631 = vmax.f32 %v534, 0.0
    %v632 = vmax.f32 %v537, 0.0
    %v633 = vmax.f32 %v539, 0.0
    %v634 = vmax.f32 %v542, 0.0
    %v635 = vmax.f32 %v544, 0.0
    %v636 = vmax.f32 %v547, 0.0
    %v637 = vmax.f32 %v549, 0.0
    %v638 = vmax.f32 %v552, 0.0
    %v639 = vmax.f32 %v554, 0.0
    %v640 = vmax.f32 %v557, 0.0
    %v641 = vmax.f32 %v559, 0.0
    %v642 = vmax.f32 %v562, 0.0
    %v643 = vmax.f32 %v564, 0.0
    %v644 = vmax.f32 %v567, 0.0
    %v645 = vmax.f32 %v569, 0.0
    %v646 = vmax.f32 %v572, 0.0
    %v647 = vmax.f32 %v574, 0.0
    %v648 = vmax.f32 %v577, 0.0
    %v649 = vmax.f32 %v579, 0.0
    %v650 = vmax.f32 %v582, 0.0
    %v651 = vmax.f32 %v584, 0.0
    %v652 = vmax.f32 %v587, 0.0
    %v653 = vmax.f32 %v589, 0.0
    %v654 = vmax.f32 %v592, 0.0
    %v655 = vmax.f32 %v594, 0.0
    %v656 = vmax.f32 %v597, 0.0
    %v657 = vmax.f32 %v599, 0.0
    %v658 = vmax.f32 %v602, 0.0
    %v659 = vmax.f32 %v604, 0.0
    %v660 = vmax.f32 %v607, 0.0
    %v661 = vmax.f32 %v609, 0.0
    %v662 = vmax.f32 %v612, 0.0
    %v663 = vmax.f32 %v614, 0.0
    %v664 = vld [vmem:[%s5] sm:$0x1]
    %v666 = vperm.slane %v664, 0
    %v668 = vmul.f32 %v616, %v666
    %v669 = vmul.f32 %v617, %v666
    %v670 = vmul.f32 %v618, %v666
    %v671 = vmul.f32 %v619, %v666
    %v672 = vmul.f32 %v620, %v666
    %v673 = vmul.f32 %v621, %v666
    %v674 = vmul.f32 %v622, %v666
    %v675 = vmul.f32 %v623, %v666
    %v676 = vmul.f32 %v624, %v666
    %v677 = vmul.f32 %v625, %v666
    %v678 = vmul.f32 %v626, %v666
    %v679 = vmul.f32 %v627, %v666
    %v680 = vmul.f32 %v628, %v666
    %v681 = vmul.f32 %v629, %v666
    %v682 = vmul.f32 %v630, %v666
    %v683 = vmul.f32 %v631, %v666
    %v684 = vmul.f32 %v632, %v666
    %v685 = vmul.f32 %v633, %v666
    %v686 = vmul.f32 %v634, %v666
    %v687 = vmul.f32 %v635, %v666
    %v688 = vmul.f32 %v636, %v666
    %v689 = vmul.f32 %v637, %v666
    %v690 = vmul.f32 %v638, %v666
    %v691 = vmul.f32 %v639, %v666
    %v692 = vmul.f32 %v640, %v666
    %v693 = vmul.f32 %v641, %v666
    %v694 = vmul.f32 %v642, %v666
    %v695 = vmul.f32 %v643, %v666
    %v696 = vmul.f32 %v644, %v666
    %v697 = vmul.f32 %v645, %v666
    %v698 = vmul.f32 %v646, %v666
    %v699 = vmul.f32 %v647, %v666
    %v700 = vmul.f32 %v648, %v666
    %v701 = vmul.f32 %v649, %v666
    %v702 = vmul.f32 %v650, %v666
    %v703 = vmul.f32 %v651, %v666
    %v704 = vmul.f32 %v652, %v666
    %v705 = vmul.f32 %v653, %v666
    %v706 = vmul.f32 %v654, %v666
    %v707 = vmul.f32 %v655, %v666
    %v708 = vmul.f32 %v656, %v666
    %v709 = vmul.f32 %v657, %v666
    %v710 = vmul.f32 %v658, %v666
    %v711 = vmul.f32 %v659, %v666
    %v712 = vmul.f32 %v660, %v666
    %v713 = vmul.f32 %v661, %v666
    %v714 = vmul.f32 %v662, %v666
    %v715 = vmul.f32 %v663, %v666
    %v716 = vsel %vm121, %v668, 0.0
    %717 = vadd.xlane.f32.xlu0 %v716
    %v718 = vpop.xlane.xlu0 %717
    %v719 = vsel %vm121, %v669, 0.0
    %720 = vadd.xlane.f32.xlu0 %v719
    %v721 = vpop.xlane.xlu0 %720
    %v722 = vsel %vm121, %v670, 0.0
    %723 = vadd.xlane.f32.xlu0 %v722
    %v724 = vpop.xlane.xlu0 %723
    %v725 = vsel %vm121, %v671, 0.0
    %726 = vadd.xlane.f32.xlu0 %v725
    %v727 = vpop.xlane.xlu0 %726
    %v728 = vsel %vm121, %v672, 0.0
    %729 = vadd.xlane.f32.xlu0 %v728
    %v730 = vpop.xlane.xlu0 %729
    %v731 = vsel %vm121, %v673, 0.0
    %732 = vadd.xlane.f32.xlu0 %v731
    %v733 = vpop.xlane.xlu0 %732
    %v734 = vsel %vm121, %v674, 0.0
    %735 = vadd.xlane.f32.xlu0 %v734
    %v736 = vpop.xlane.xlu0 %735
    %v737 = vsel %vm121, %v675, 0.0
    %738 = vadd.xlane.f32.xlu0 %v737
    %v739 = vpop.xlane.xlu0 %738
    %v740 = vsel %vm121, %v676, 0.0
    %741 = vadd.xlane.f32.xlu0 %v740
    %v742 = vpop.xlane.xlu0 %741
    %v743 = vsel %vm121, %v677, 0.0
    %744 = vadd.xlane.f32.xlu0 %v743
    %v745 = vpop.xlane.xlu0 %744
    %v746 = vsel %vm121, %v678, 0.0
    %747 = vadd.xlane.f32.xlu0 %v746
    %v748 = vpop.xlane.xlu0 %747
    %v749 = vsel %vm121, %v679, 0.0
    %750 = vadd.xlane.f32.xlu0 %v749
    %v751 = vpop.xlane.xlu0 %750
    %v752 = vsel %vm121, %v680, 0.0
    %753 = vadd.xlane.f32.xlu0 %v752
    %v754 = vpop.xlane.xlu0 %753
    %v755 = vsel %vm121, %v681, 0.0
    %756 = vadd.xlane.f32.xlu0 %v755
    %v757 = vpop.xlane.xlu0 %756
    %v758 = vsel %vm121, %v682, 0.0
    %759 = vadd.xlane.f32.xlu0 %v758
    %v760 = vpop.xlane.xlu0 %759
    %v761 = vsel %vm121, %v683, 0.0
    %762 = vadd.xlane.f32.xlu0 %v761
    %v763 = vpop.xlane.xlu0 %762
    %v764 = vsel %vm121, %v684, 0.0
    %765 = vadd.xlane.f32.xlu0 %v764
    %v766 = vpop.xlane.xlu0 %765
    %v767 = vsel %vm121, %v685, 0.0
    %768 = vadd.xlane.f32.xlu0 %v767
    %v769 = vpop.xlane.xlu0 %768
    %v770 = vsel %vm121, %v686, 0.0
    %771 = vadd.xlane.f32.xlu0 %v770
    %v772 = vpop.xlane.xlu0 %771
    %v773 = vsel %vm121, %v687, 0.0
    %774 = vadd.xlane.f32.xlu0 %v773
    %v775 = vpop.xlane.xlu0 %774
    %v776 = vsel %vm121, %v688, 0.0
    %777 = vadd.xlane.f32.xlu0 %v776
    %v778 = vpop.xlane.xlu0 %777
    %v779 = vsel %vm121, %v689, 0.0
    %780 = vadd.xlane.f32.xlu0 %v779
    %v781 = vpop.xlane.xlu0 %780
    %v782 = vsel %vm121, %v690, 0.0
    %783 = vadd.xlane.f32.xlu0 %v782
    %v784 = vpop.xlane.xlu0 %783
    %v785 = vsel %vm121, %v691, 0.0
    %786 = vadd.xlane.f32.xlu0 %v785
    %v787 = vpop.xlane.xlu0 %786
    %v788 = vsel %vm121, %v692, 0.0
    %789 = vadd.xlane.f32.xlu0 %v788
    %v790 = vpop.xlane.xlu0 %789
    %v791 = vsel %vm121, %v693, 0.0
    %792 = vadd.xlane.f32.xlu0 %v791
    %v793 = vpop.xlane.xlu0 %792
    %v794 = vsel %vm121, %v694, 0.0
    %795 = vadd.xlane.f32.xlu0 %v794
    %v796 = vpop.xlane.xlu0 %795
    %v797 = vsel %vm121, %v695, 0.0
    %798 = vadd.xlane.f32.xlu0 %v797
    %v799 = vpop.xlane.xlu0 %798
    %v800 = vsel %vm121, %v696, 0.0
    %801 = vadd.xlane.f32.xlu0 %v800
    %v802 = vpop.xlane.xlu0 %801
    %v803 = vsel %vm121, %v697, 0.0
    %804 = vadd.xlane.f32.xlu0 %v803
    %v805 = vpop.xlane.xlu0 %804
    %v806 = vsel %vm121, %v698, 0.0
    %807 = vadd.xlane.f32.xlu0 %v806
    %v808 = vpop.xlane.xlu0 %807
    %v809 = vsel %vm121, %v699, 0.0
    %810 = vadd.xlane.f32.xlu0 %v809
    %v811 = vpop.xlane.xlu0 %810
    %v812 = vsel %vm121, %v700, 0.0
    %813 = vadd.xlane.f32.xlu0 %v812
    %v814 = vpop.xlane.xlu0 %813
    %v815 = vsel %vm121, %v701, 0.0
    %816 = vadd.xlane.f32.xlu0 %v815
    %v817 = vpop.xlane.xlu0 %816
    %v818 = vsel %vm121, %v702, 0.0
    %819 = vadd.xlane.f32.xlu0 %v818
    %v820 = vpop.xlane.xlu0 %819
    %v821 = vsel %vm121, %v703, 0.0
    %822 = vadd.xlane.f32.xlu0 %v821
    %v823 = vpop.xlane.xlu0 %822
    %v824 = vsel %vm121, %v704, 0.0
    %825 = vadd.xlane.f32.xlu0 %v824
    %v826 = vpop.xlane.xlu0 %825
    %v827 = vsel %vm121, %v705, 0.0
    %828 = vadd.xlane.f32.xlu0 %v827
    %v829 = vpop.xlane.xlu0 %828
    %v830 = vsel %vm121, %v706, 0.0
    %831 = vadd.xlane.f32.xlu0 %v830
    %v832 = vpop.xlane.xlu0 %831
    %v833 = vsel %vm121, %v707, 0.0
    %834 = vadd.xlane.f32.xlu0 %v833
    %v835 = vpop.xlane.xlu0 %834
    %v836 = vsel %vm121, %v708, 0.0
    %837 = vadd.xlane.f32.xlu0 %v836
    %v838 = vpop.xlane.xlu0 %837
    %v839 = vsel %vm121, %v709, 0.0
    %840 = vadd.xlane.f32.xlu0 %v839
    %v841 = vpop.xlane.xlu0 %840
    %v842 = vsel %vm121, %v710, 0.0
    %843 = vadd.xlane.f32.xlu0 %v842
    %v844 = vpop.xlane.xlu0 %843
    %v845 = vsel %vm121, %v711, 0.0
    %846 = vadd.xlane.f32.xlu0 %v845
    %v847 = vpop.xlane.xlu0 %846
    %v848 = vsel %vm121, %v712, 0.0
    %849 = vadd.xlane.f32.xlu0 %v848
    %v850 = vpop.xlane.xlu0 %849
    %v851 = vsel %vm121, %v713, 0.0
    %852 = vadd.xlane.f32.xlu0 %v851
    %v853 = vpop.xlane.xlu0 %852
    %v854 = vsel %vm121, %v714, 0.0
    %855 = vadd.xlane.f32.xlu0 %v854
    %v856 = vpop.xlane.xlu0 %855
    %v857 = vsel %vm121, %v715, 0.0
    %858 = vadd.xlane.f32.xlu0 %v857
    %v859 = vpop.xlane.xlu0 %858
    %s860 = sld [smem:[#allocation2]]
    %v861 = vstv %s860
    %v862 = vadd.f32 %v718, %v861
    %v863 = vadd.f32 %v721, %v861
    %v864 = vadd.f32 %v724, %v861
    %v865 = vadd.f32 %v727, %v861
    %v866 = vadd.f32 %v730, %v861
    %v867 = vadd.f32 %v733, %v861
    %v868 = vadd.f32 %v736, %v861
    %v869 = vadd.f32 %v739, %v861
    %v870 = vadd.f32 %v742, %v861
    %v871 = vadd.f32 %v745, %v861
    %v872 = vadd.f32 %v748, %v861
    %v873 = vadd.f32 %v751, %v861
    %v874 = vadd.f32 %v754, %v861
    %v875 = vadd.f32 %v757, %v861
    %v876 = vadd.f32 %v760, %v861
    %v877 = vadd.f32 %v763, %v861
    %v878 = vadd.f32 %v766, %v861
    %v879 = vadd.f32 %v769, %v861
    %v880 = vadd.f32 %v772, %v861
    %v881 = vadd.f32 %v775, %v861
    %v882 = vadd.f32 %v778, %v861
    %v883 = vadd.f32 %v781, %v861
    %v884 = vadd.f32 %v784, %v861
    %v885 = vadd.f32 %v787, %v861
    %v886 = vadd.f32 %v790, %v861
    %v887 = vadd.f32 %v793, %v861
    %v888 = vadd.f32 %v796, %v861
    %v889 = vadd.f32 %v799, %v861
    %v890 = vadd.f32 %v802, %v861
    %v891 = vadd.f32 %v805, %v861
    %v892 = vadd.f32 %v808, %v861
    %v893 = vadd.f32 %v811, %v861
    %v894 = vadd.f32 %v814, %v861
    %v895 = vadd.f32 %v817, %v861
    %v896 = vadd.f32 %v820, %v861
    %v897 = vadd.f32 %v823, %v861
    %v898 = vadd.f32 %v826, %v861
    %v899 = vadd.f32 %v829, %v861
    %v900 = vadd.f32 %v832, %v861
    %v901 = vadd.f32 %v835, %v861
    %v902 = vadd.f32 %v838, %v861
    %v903 = vadd.f32 %v841, %v861
    %v904 = vadd.f32 %v844, %v861
    %v905 = vadd.f32 %v847, %v861
    %v906 = vadd.f32 %v850, %v861
    %v907 = vadd.f32 %v853, %v861
    %v908 = vadd.f32 %v856, %v861
    %v909 = vadd.f32 %v859, %v861
    %v910 = vmul.f32 %v862, 0.5
    %v911 = vmul.f32 %v863, 0.5
    %v912 = vmul.f32 %v864, 0.5
    %v913 = vmul.f32 %v865, 0.5
    %v914 = vmul.f32 %v866, 0.5
    %v915 = vmul.f32 %v867, 0.5
    %v916 = vmul.f32 %v868, 0.5
    %v917 = vmul.f32 %v869, 0.5
    %v918 = vmul.f32 %v870, 0.5
    %v919 = vmul.f32 %v871, 0.5
    %v920 = vmul.f32 %v872, 0.5
    %v921 = vmul.f32 %v873, 0.5
    %v922 = vmul.f32 %v874, 0.5
    %v923 = vmul.f32 %v875, 0.5
    %v924 = vmul.f32 %v876, 0.5
    %v925 = vmul.f32 %v877, 0.5
    %v926 = vmul.f32 %v878, 0.5
    %v927 = vmul.f32 %v879, 0.5
    %v928 = vmul.f32 %v880, 0.5
    %v929 = vmul.f32 %v881, 0.5
    %v930 = vmul.f32 %v882, 0.5
    %v931 = vmul.f32 %v883, 0.5
    %v932 = vmul.f32 %v884, 0.5
    %v933 = vmul.f32 %v885, 0.5
    %v934 = vmul.f32 %v886, 0.5
    %v935 = vmul.f32 %v887, 0.5
    %v936 = vmul.f32 %v888, 0.5
    %v937 = vmul.f32 %v889, 0.5
    %v938 = vmul.f32 %v890, 0.5
    %v939 = vmul.f32 %v891, 0.5
    %v940 = vmul.f32 %v892, 0.5
    %v941 = vmul.f32 %v893, 0.5
    %v942 = vmul.f32 %v894, 0.5
    %v943 = vmul.f32 %v895, 0.5
    %v944 = vmul.f32 %v896, 0.5
    %v945 = vmul.f32 %v897, 0.5
    %v946 = vmul.f32 %v898, 0.5
    %v947 = vmul.f32 %v899, 0.5
    %v948 = vmul.f32 %v900, 0.5
    %v949 = vmul.f32 %v901, 0.5
    %v950 = vmul.f32 %v902, 0.5
    %v951 = vmul.f32 %v903, 0.5
    %v952 = vmul.f32 %v904, 0.5
    %v953 = vmul.f32 %v905, 0.5
    %v954 = vmul.f32 %v906, 0.5
    %v955 = vmul.f32 %v907, 0.5
    %v956 = vmul.f32 %v908, 0.5
    %v957 = vmul.f32 %v909, 0.5
    %v958 = vtanh.pop %v910
    %v959 = vtanh.pop %v911
    %v960 = vtanh.pop %v912
    %v961 = vtanh.pop %v913
    %v962 = vtanh.pop %v914
    %v963 = vtanh.pop %v915
    %v964 = vtanh.pop %v916
    %v965 = vtanh.pop %v917
    %v966 = vtanh.pop %v918
    %v967 = vtanh.pop %v919
    %v968 = vtanh.pop %v920
    %v969 = vtanh.pop %v921
    %v970 = vtanh.pop %v922
    %v971 = vtanh.pop %v923
    %v972 = vtanh.pop %v924
    %v973 = vtanh.pop %v925
    %v974 = vtanh.pop %v926
    %v975 = vtanh.pop %v927
    %v976 = vtanh.pop %v928
    %v977 = vtanh.pop %v929
    %v978 = vtanh.pop %v930
    %v979 = vtanh.pop %v931
    %v980 = vtanh.pop %v932
    %v981 = vtanh.pop %v933
    %v982 = vtanh.pop %v934
    %v983 = vtanh.pop %v935
    %v984 = vtanh.pop %v936
    %v985 = vtanh.pop %v937
    %v986 = vtanh.pop %v938
    %v987 = vtanh.pop %v939
    %v988 = vtanh.pop %v940
    %v989 = vtanh.pop %v941
    %v990 = vtanh.pop %v942
    %v991 = vtanh.pop %v943
    %v992 = vtanh.pop %v944
    %v993 = vtanh.pop %v945
    %v994 = vtanh.pop %v946
    %v995 = vtanh.pop %v947
    %v996 = vtanh.pop %v948
    %v997 = vtanh.pop %v949
    %v998 = vtanh.pop %v950
    %v999 = vtanh.pop %v951
    %v1000 = vtanh.pop %v952
    %v1001 = vtanh.pop %v953
    %v1002 = vtanh.pop %v954
    %v1003 = vtanh.pop %v955
    %v1004 = vtanh.pop %v956
    %v1005 = vtanh.pop %v957
    %v1006 = vmul.f32 %v958, 0.5
    %v1007 = vmul.f32 %v959, 0.5
    %v1008 = vmul.f32 %v960, 0.5
    %v1009 = vmul.f32 %v961, 0.5
    %v1010 = vmul.f32 %v962, 0.5
    %v1011 = vmul.f32 %v963, 0.5
    %v1012 = vmul.f32 %v964, 0.5
    %v1013 = vmul.f32 %v965, 0.5
    %v1014 = vmul.f32 %v966, 0.5
    %v1015 = vmul.f32 %v967, 0.5
    %v1016 = vmul.f32 %v968, 0.5
    %v1017 = vmul.f32 %v969, 0.5
    %v1018 = vmul.f32 %v970, 0.5
    %v1019 = vmul.f32 %v971, 0.5
    %v1020 = vmul.f32 %v972, 0.5
    %v1021 = vmul.f32 %v973, 0.5
    %v1022 = vmul.f32 %v974, 0.5
    %v1023 = vmul.f32 %v975, 0.5
    %v1024 = vmul.f32 %v976, 0.5
    %v1025 = vmul.f32 %v977, 0.5
    %v1026 = vmul.f32 %v978, 0.5
    %v1027 = vmul.f32 %v979, 0.5
    %v1028 = vmul.f32 %v980, 0.5
    %v1029 = vmul.f32 %v981, 0.5
    %v1030 = vmul.f32 %v982, 0.5
    %v1031 = vmul.f32 %v983, 0.5
    %v1032 = vmul.f32 %v984, 0.5
    %v1033 = vmul.f32 %v985, 0.5
    %v1034 = vmul.f32 %v986, 0.5
    %v1035 = vmul.f32 %v987, 0.5
    %v1036 = vmul.f32 %v988, 0.5
    %v1037 = vmul.f32 %v989, 0.5
    %v1038 = vmul.f32 %v990, 0.5
    %v1039 = vmul.f32 %v991, 0.5
    %v1040 = vmul.f32 %v992, 0.5
    %v1041 = vmul.f32 %v993, 0.5
    %v1042 = vmul.f32 %v994, 0.5
    %v1043 = vmul.f32 %v995, 0.5
    %v1044 = vmul.f32 %v996, 0.5
    %v1045 = vmul.f32 %v997, 0.5
    %v1046 = vmul.f32 %v998, 0.5
    %v1047 = vmul.f32 %v999, 0.5
    %v1048 = vmul.f32 %v1000, 0.5
    %v1049 = vmul.f32 %v1001, 0.5
    %v1050 = vmul.f32 %v1002, 0.5
    %v1051 = vmul.f32 %v1003, 0.5
    %v1052 = vmul.f32 %v1004, 0.5
    %v1053 = vmul.f32 %v1005, 0.5
    %v1054 = vadd.f32 %v1006, 0.5
    %v1055 = vadd.f32 %v1007, 0.5
    %v1056 = vadd.f32 %v1008, 0.5
    %v1057 = vadd.f32 %v1009, 0.5
    %v1058 = vadd.f32 %v1010, 0.5
    %v1059 = vadd.f32 %v1011, 0.5
    %v1060 = vadd.f32 %v1012, 0.5
    %v1061 = vadd.f32 %v1013, 0.5
    %v1062 = vadd.f32 %v1014, 0.5
    %v1063 = vadd.f32 %v1015, 0.5
    %v1064 = vadd.f32 %v1016, 0.5
    %v1065 = vadd.f32 %v1017, 0.5
    %v1066 = vadd.f32 %v1018, 0.5
    %v1067 = vadd.f32 %v1019, 0.5
    %v1068 = vadd.f32 %v1020, 0.5
    %v1069 = vadd.f32 %v1021, 0.5
    %v1070 = vadd.f32 %v1022, 0.5
    %v1071 = vadd.f32 %v1023, 0.5
    %v1072 = vadd.f32 %v1024, 0.5
    %v1073 = vadd.f32 %v1025, 0.5
    %v1074 = vadd.f32 %v1026, 0.5
    %v1075 = vadd.f32 %v1027, 0.5
    %v1076 = vadd.f32 %v1028, 0.5
    %v1077 = vadd.f32 %v1029, 0.5
    %v1078 = vadd.f32 %v1030, 0.5
    %v1079 = vadd.f32 %v1031, 0.5
    %v1080 = vadd.f32 %v1032, 0.5
    %v1081 = vadd.f32 %v1033, 0.5
    %v1082 = vadd.f32 %v1034, 0.5
    %v1083 = vadd.f32 %v1035, 0.5
    %v1084 = vadd.f32 %v1036, 0.5
    %v1085 = vadd.f32 %v1037, 0.5
    %v1086 = vadd.f32 %v1038, 0.5
    %v1087 = vadd.f32 %v1039, 0.5
    %v1088 = vadd.f32 %v1040, 0.5
    %v1089 = vadd.f32 %v1041, 0.5
    %v1090 = vadd.f32 %v1042, 0.5
    %v1091 = vadd.f32 %v1043, 0.5
    %v1092 = vadd.f32 %v1044, 0.5
    %v1093 = vadd.f32 %v1045, 0.5
    %v1094 = vadd.f32 %v1046, 0.5
    %v1095 = vadd.f32 %v1047, 0.5
    %v1096 = vadd.f32 %v1048, 0.5
    %v1097 = vadd.f32 %v1049, 0.5
    %v1098 = vadd.f32 %v1050, 0.5
    %v1099 = vadd.f32 %v1051, 0.5
    %v1100 = vadd.f32 %v1052, 0.5
    %v1101 = vadd.f32 %v1053, 0.5
    %v1150 = vperm.slane %v1054, 0
    %v1151 = vperm.slane %v1054, 1
    %v1152 = vperm.slane %v1054, 2
    %v1153 = vperm.slane %v1054, 3
    %v1154 = vperm.slane %v1054, 4
    %v1155 = vperm.slane %v1054, 5
    %v1156 = vperm.slane %v1054, 6
    %v1157 = vperm.slane %v1054, 7
    %v1158 = vperm.slane %v1055, 0
    %v1159 = vperm.slane %v1055, 1
    %v1160 = vperm.slane %v1055, 2
    %v1161 = vperm.slane %v1055, 3
    %v1162 = vperm.slane %v1055, 4
    %v1163 = vperm.slane %v1055, 5
    %v1164 = vperm.slane %v1055, 6
    %v1165 = vperm.slane %v1055, 7
    %v1166 = vperm.slane %v1056, 0
    %v1167 = vperm.slane %v1056, 1
    %v1168 = vperm.slane %v1056, 2
    %v1169 = vperm.slane %v1056, 3
    %v1170 = vperm.slane %v1056, 4
    %v1171 = vperm.slane %v1056, 5
    %v1172 = vperm.slane %v1056, 6
    %v1173 = vperm.slane %v1056, 7
    %v1174 = vperm.slane %v1057, 0
    %v1175 = vperm.slane %v1057, 1
    %v1176 = vperm.slane %v1057, 2
    %v1177 = vperm.slane %v1057, 3
    %v1178 = vperm.slane %v1057, 4
    %v1179 = vperm.slane %v1057, 5
    %v1180 = vperm.slane %v1057, 6
    %v1181 = vperm.slane %v1057, 7
    %v1182 = vperm.slane %v1058, 0
    %v1183 = vperm.slane %v1058, 1
    %v1184 = vperm.slane %v1058, 2
    %v1185 = vperm.slane %v1058, 3
    %v1186 = vperm.slane %v1058, 4
    %v1187 = vperm.slane %v1058, 5
    %v1188 = vperm.slane %v1058, 6
    %v1189 = vperm.slane %v1058, 7
    %v1190 = vperm.slane %v1059, 0
    %v1191 = vperm.slane %v1059, 1
    %v1192 = vperm.slane %v1059, 2
    %v1193 = vperm.slane %v1059, 3
    %v1194 = vperm.slane %v1059, 4
    %v1195 = vperm.slane %v1059, 5
    %v1196 = vperm.slane %v1059, 6
    %v1197 = vperm.slane %v1059, 7
    %v1198 = vperm.slane %v1060, 0
    %v1199 = vperm.slane %v1060, 1
    %v1200 = vperm.slane %v1060, 2
    %v1201 = vperm.slane %v1060, 3
    %v1202 = vperm.slane %v1060, 4
    %v1203 = vperm.slane %v1060, 5
    %v1204 = vperm.slane %v1060, 6
    %v1205 = vperm.slane %v1060, 7
    %v1206 = vperm.slane %v1061, 0
    %v1207 = vperm.slane %v1061, 1
    %v1208 = vperm.slane %v1061, 2
    %v1209 = vperm.slane %v1061, 3
    %v1210 = vperm.slane %v1061, 4
    %v1211 = vperm.slane %v1061, 5
    %v1212 = vperm.slane %v1061, 6
    %v1213 = vperm.slane %v1061, 7
    %v1214 = vperm.slane %v1062, 0
    %v1215 = vperm.slane %v1062, 1
    %v1216 = vperm.slane %v1062, 2
    %v1217 = vperm.slane %v1062, 3
    %v1218 = vperm.slane %v1062, 4
    %v1219 = vperm.slane %v1062, 5
    %v1220 = vperm.slane %v1062, 6
    %v1221 = vperm.slane %v1062, 7
    %v1222 = vperm.slane %v1063, 0
    %v1223 = vperm.slane %v1063, 1
    %v1224 = vperm.slane %v1063, 2
    %v1225 = vperm.slane %v1063, 3
    %v1226 = vperm.slane %v1063, 4
    %v1227 = vperm.slane %v1063, 5
    %v1228 = vperm.slane %v1063, 6
    %v1229 = vperm.slane %v1063, 7
    %v1230 = vperm.slane %v1064, 0
    %v1231 = vperm.slane %v1064, 1
    %v1232 = vperm.slane %v1064, 2
    %v1233 = vperm.slane %v1064, 3
    %v1234 = vperm.slane %v1064, 4
    %v1235 = vperm.slane %v1064, 5
    %v1236 = vperm.slane %v1064, 6
    %v1237 = vperm.slane %v1064, 7
    %v1238 = vperm.slane %v1065, 0
    %v1239 = vperm.slane %v1065, 1
    %v1240 = vperm.slane %v1065, 2
    %v1241 = vperm.slane %v1065, 3
    %v1242 = vperm.slane %v1065, 4
    %v1243 = vperm.slane %v1065, 5
    %v1244 = vperm.slane %v1065, 6
    %v1245 = vperm.slane %v1065, 7
    %v1246 = vperm.slane %v1066, 0
    %v1247 = vperm.slane %v1066, 1
    %v1248 = vperm.slane %v1066, 2
    %v1249 = vperm.slane %v1066, 3
    %v1250 = vperm.slane %v1066, 4
    %v1251 = vperm.slane %v1066, 5
    %v1252 = vperm.slane %v1066, 6
    %v1253 = vperm.slane %v1066, 7
    %v1254 = vperm.slane %v1067, 0
    %v1255 = vperm.slane %v1067, 1
    %v1256 = vperm.slane %v1067, 2
    %v1257 = vperm.slane %v1067, 3
    %v1258 = vperm.slane %v1067, 4
    %v1259 = vperm.slane %v1067, 5
    %v1260 = vperm.slane %v1067, 6
    %v1261 = vperm.slane %v1067, 7
    %v1262 = vperm.slane %v1068, 0
    %v1263 = vperm.slane %v1068, 1
    %v1264 = vperm.slane %v1068, 2
    %v1265 = vperm.slane %v1068, 3
    %v1266 = vperm.slane %v1068, 4
    %v1267 = vperm.slane %v1068, 5
    %v1268 = vperm.slane %v1068, 6
    %v1269 = vperm.slane %v1068, 7
    %v1270 = vperm.slane %v1069, 0
    %v1271 = vperm.slane %v1069, 1
    %v1272 = vperm.slane %v1069, 2
    %v1273 = vperm.slane %v1069, 3
    %v1274 = vperm.slane %v1069, 4
    %v1275 = vperm.slane %v1069, 5
    %v1276 = vperm.slane %v1069, 6
    %v1277 = vperm.slane %v1069, 7
    %v1278 = vperm.slane %v1070, 0
    %v1279 = vperm.slane %v1070, 1
    %v1280 = vperm.slane %v1070, 2
    %v1281 = vperm.slane %v1070, 3
    %v1282 = vperm.slane %v1070, 4
    %v1283 = vperm.slane %v1070, 5
    %v1284 = vperm.slane %v1070, 6
    %v1285 = vperm.slane %v1070, 7
    %v1286 = vperm.slane %v1071, 0
    %v1287 = vperm.slane %v1071, 1
    %v1288 = vperm.slane %v1071, 2
    %v1289 = vperm.slane %v1071, 3
    %v1290 = vperm.slane %v1071, 4
    %v1291 = vperm.slane %v1071, 5
    %v1292 = vperm.slane %v1071, 6
    %v1293 = vperm.slane %v1071, 7
    %v1294 = vperm.slane %v1072, 0
    %v1295 = vperm.slane %v1072, 1
    %v1296 = vperm.slane %v1072, 2
    %v1297 = vperm.slane %v1072, 3
    %v1298 = vperm.slane %v1072, 4
    %v1299 = vperm.slane %v1072, 5
    %v1300 = vperm.slane %v1072, 6
    %v1301 = vperm.slane %v1072, 7
    %v1302 = vperm.slane %v1073, 0
    %v1303 = vperm.slane %v1073, 1
    %v1304 = vperm.slane %v1073, 2
    %v1305 = vperm.slane %v1073, 3
    %v1306 = vperm.slane %v1073, 4
    %v1307 = vperm.slane %v1073, 5
    %v1308 = vperm.slane %v1073, 6
    %v1309 = vperm.slane %v1073, 7
    %v1310 = vperm.slane %v1074, 0
    %v1311 = vperm.slane %v1074, 1
    %v1312 = vperm.slane %v1074, 2
    %v1313 = vperm.slane %v1074, 3
    %v1314 = vperm.slane %v1074, 4
    %v1315 = vperm.slane %v1074, 5
    %v1316 = vperm.slane %v1074, 6
    %v1317 = vperm.slane %v1074, 7
    %v1318 = vperm.slane %v1075, 0
    %v1319 = vperm.slane %v1075, 1
    %v1320 = vperm.slane %v1075, 2
    %v1321 = vperm.slane %v1075, 3
    %v1322 = vperm.slane %v1075, 4
    %v1323 = vperm.slane %v1075, 5
    %v1324 = vperm.slane %v1075, 6
    %v1325 = vperm.slane %v1075, 7
    %v1326 = vperm.slane %v1076, 0
    %v1327 = vperm.slane %v1076, 1
    %v1328 = vperm.slane %v1076, 2
    %v1329 = vperm.slane %v1076, 3
    %v1330 = vperm.slane %v1076, 4
    %v1331 = vperm.slane %v1076, 5
    %v1332 = vperm.slane %v1076, 6
    %v1333 = vperm.slane %v1076, 7
    %v1334 = vperm.slane %v1077, 0
    %v1335 = vperm.slane %v1077, 1
    %v1336 = vperm.slane %v1077, 2
    %v1337 = vperm.slane %v1077, 3
    %v1338 = vperm.slane %v1077, 4
    %v1339 = vperm.slane %v1077, 5
    %v1340 = vperm.slane %v1077, 6
    %v1341 = vperm.slane %v1077, 7
    %v1342 = vperm.slane %v1078, 0
    %v1343 = vperm.slane %v1078, 1
    %v1344 = vperm.slane %v1078, 2
    %v1345 = vperm.slane %v1078, 3
    %v1346 = vperm.slane %v1078, 4
    %v1347 = vperm.slane %v1078, 5
    %v1348 = vperm.slane %v1078, 6
    %v1349 = vperm.slane %v1078, 7
    %v1350 = vperm.slane %v1079, 0
    %v1351 = vperm.slane %v1079, 1
    %v1352 = vperm.slane %v1079, 2
    %v1353 = vperm.slane %v1079, 3
    %v1354 = vperm.slane %v1079, 4
    %v1355 = vperm.slane %v1079, 5
    %v1356 = vperm.slane %v1079, 6
    %v1357 = vperm.slane %v1079, 7
    %v1358 = vperm.slane %v1080, 0
    %v1359 = vperm.slane %v1080, 1
    %v1360 = vperm.slane %v1080, 2
    %v1361 = vperm.slane %v1080, 3
    %v1362 = vperm.slane %v1080, 4
    %v1363 = vperm.slane %v1080, 5
    %v1364 = vperm.slane %v1080, 6
    %v1365 = vperm.slane %v1080, 7
    %v1366 = vperm.slane %v1081, 0
    %v1367 = vperm.slane %v1081, 1
    %v1368 = vperm.slane %v1081, 2
    %v1369 = vperm.slane %v1081, 3
    %v1370 = vperm.slane %v1081, 4
    %v1371 = vperm.slane %v1081, 5
    %v1372 = vperm.slane %v1081, 6
    %v1373 = vperm.slane %v1081, 7
    %v1374 = vperm.slane %v1082, 0
    %v1375 = vperm.slane %v1082, 1
    %v1376 = vperm.slane %v1082, 2
    %v1377 = vperm.slane %v1082, 3
    %v1378 = vperm.slane %v1082, 4
    %v1379 = vperm.slane %v1082, 5
    %v1380 = vperm.slane %v1082, 6
    %v1381 = vperm.slane %v1082, 7
    %v1382 = vperm.slane %v1083, 0
    %v1383 = vperm.slane %v1083, 1
    %v1384 = vperm.slane %v1083, 2
    %v1385 = vperm.slane %v1083, 3
    %v1386 = vperm.slane %v1083, 4
    %v1387 = vperm.slane %v1083, 5
    %v1388 = vperm.slane %v1083, 6
    %v1389 = vperm.slane %v1083, 7
    %v1390 = vperm.slane %v1084, 0
    %v1391 = vperm.slane %v1084, 1
    %v1392 = vperm.slane %v1084, 2
    %v1393 = vperm.slane %v1084, 3
    %v1394 = vperm.slane %v1084, 4
    %v1395 = vperm.slane %v1084, 5
    %v1396 = vperm.slane %v1084, 6
    %v1397 = vperm.slane %v1084, 7
    %v1398 = vperm.slane %v1085, 0
    %v1399 = vperm.slane %v1085, 1
    %v1400 = vperm.slane %v1085, 2
    %v1401 = vperm.slane %v1085, 3
    %v1402 = vperm.slane %v1085, 4
    %v1403 = vperm.slane %v1085, 5
    %v1404 = vperm.slane %v1085, 6
    %v1405 = vperm.slane %v1085, 7
    %v1406 = vperm.slane %v1086, 0
    %v1407 = vperm.slane %v1086, 1
    %v1408 = vperm.slane %v1086, 2
    %v1409 = vperm.slane %v1086, 3
    %v1410 = vperm.slane %v1086, 4
    %v1411 = vperm.slane %v1086, 5
    %v1412 = vperm.slane %v1086, 6
    %v1413 = vperm.slane %v1086, 7
    %v1414 = vperm.slane %v1087, 0
    %v1415 = vperm.slane %v1087, 1
    %v1416 = vperm.slane %v1087, 2
    %v1417 = vperm.slane %v1087, 3
    %v1418 = vperm.slane %v1087, 4
    %v1419 = vperm.slane %v1087, 5
    %v1420 = vperm.slane %v1087, 6
    %v1421 = vperm.slane %v1087, 7
    %v1422 = vperm.slane %v1088, 0
    %v1423 = vperm.slane %v1088, 1
    %v1424 = vperm.slane %v1088, 2
    %v1425 = vperm.slane %v1088, 3
    %v1426 = vperm.slane %v1088, 4
    %v1427 = vperm.slane %v1088, 5
    %v1428 = vperm.slane %v1088, 6
    %v1429 = vperm.slane %v1088, 7
    %v1430 = vperm.slane %v1089, 0
    %v1431 = vperm.slane %v1089, 1
    %v1432 = vperm.slane %v1089, 2
    %v1433 = vperm.slane %v1089, 3
    %v1434 = vperm.slane %v1089, 4
    %v1435 = vperm.slane %v1089, 5
    %v1436 = vperm.slane %v1089, 6
    %v1437 = vperm.slane %v1089, 7
    %v1438 = vperm.slane %v1090, 0
    %v1439 = vperm.slane %v1090, 1
    %v1440 = vperm.slane %v1090, 2
    %v1441 = vperm.slane %v1090, 3
    %v1442 = vperm.slane %v1090, 4
    %v1443 = vperm.slane %v1090, 5
    %v1444 = vperm.slane %v1090, 6
    %v1445 = vperm.slane %v1090, 7
    %v1446 = vperm.slane %v1091, 0
    %v1447 = vperm.slane %v1091, 1
    %v1448 = vperm.slane %v1091, 2
    %v1449 = vperm.slane %v1091, 3
    %v1450 = vperm.slane %v1091, 4
    %v1451 = vperm.slane %v1091, 5
    %v1452 = vperm.slane %v1091, 6
    %v1453 = vperm.slane %v1091, 7
    %v1454 = vperm.slane %v1092, 0
    %v1455 = vperm.slane %v1092, 1
    %v1456 = vperm.slane %v1092, 2
    %v1457 = vperm.slane %v1092, 3
    %v1458 = vperm.slane %v1092, 4
    %v1459 = vperm.slane %v1092, 5
    %v1460 = vperm.slane %v1092, 6
    %v1461 = vperm.slane %v1092, 7
    %v1462 = vperm.slane %v1093, 0
    %v1463 = vperm.slane %v1093, 1
    %v1464 = vperm.slane %v1093, 2
    %v1465 = vperm.slane %v1093, 3
    %v1466 = vperm.slane %v1093, 4
    %v1467 = vperm.slane %v1093, 5
    %v1468 = vperm.slane %v1093, 6
    %v1469 = vperm.slane %v1093, 7
    %v1470 = vperm.slane %v1094, 0
    %v1471 = vperm.slane %v1094, 1
    %v1472 = vperm.slane %v1094, 2
    %v1473 = vperm.slane %v1094, 3
    %v1474 = vperm.slane %v1094, 4
    %v1475 = vperm.slane %v1094, 5
    %v1476 = vperm.slane %v1094, 6
    %v1477 = vperm.slane %v1094, 7
    %v1478 = vperm.slane %v1095, 0
    %v1479 = vperm.slane %v1095, 1
    %v1480 = vperm.slane %v1095, 2
    %v1481 = vperm.slane %v1095, 3
    %v1482 = vperm.slane %v1095, 4
    %v1483 = vperm.slane %v1095, 5
    %v1484 = vperm.slane %v1095, 6
    %v1485 = vperm.slane %v1095, 7
    %v1486 = vperm.slane %v1096, 0
    %v1487 = vperm.slane %v1096, 1
    %v1488 = vperm.slane %v1096, 2
    %v1489 = vperm.slane %v1096, 3
    %v1490 = vperm.slane %v1096, 4
    %v1491 = vperm.slane %v1096, 5
    %v1492 = vperm.slane %v1096, 6
    %v1493 = vperm.slane %v1096, 7
    %v1494 = vperm.slane %v1097, 0
    %v1495 = vperm.slane %v1097, 1
    %v1496 = vperm.slane %v1097, 2
    %v1497 = vperm.slane %v1097, 3
    %v1498 = vperm.slane %v1097, 4
    %v1499 = vperm.slane %v1097, 5
    %v1500 = vperm.slane %v1097, 6
    %v1501 = vperm.slane %v1097, 7
    %v1502 = vperm.slane %v1098, 0
    %v1503 = vperm.slane %v1098, 1
    %v1504 = vperm.slane %v1098, 2
    %v1505 = vperm.slane %v1098, 3
    %v1506 = vperm.slane %v1098, 4
    %v1507 = vperm.slane %v1098, 5
    %v1508 = vperm.slane %v1098, 6
    %v1509 = vperm.slane %v1098, 7
    %v1510 = vperm.slane %v1099, 0
    %v1511 = vperm.slane %v1099, 1
    %v1512 = vperm.slane %v1099, 2
    %v1513 = vperm.slane %v1099, 3
    %v1514 = vperm.slane %v1099, 4
    %v1515 = vperm.slane %v1099, 5
    %v1516 = vperm.slane %v1099, 6
    %v1517 = vperm.slane %v1099, 7
    %v1518 = vperm.slane %v1100, 0
    %v1519 = vperm.slane %v1100, 1
    %v1520 = vperm.slane %v1100, 2
    %v1521 = vperm.slane %v1100, 3
    %v1522 = vperm.slane %v1100, 4
    %v1523 = vperm.slane %v1100, 5
    %v1524 = vperm.slane %v1100, 6
    %v1525 = vperm.slane %v1100, 7
    %v1526 = vperm.slane %v1101, 0
    %v1527 = vperm.slane %v1101, 1
    %v1528 = vperm.slane %v1101, 2
    %v1529 = vperm.slane %v1101, 3
    %v1530 = vperm.slane %v1101, 4
    %v1531 = vperm.slane %v1101, 5
    %v1532 = vperm.slane %v1101, 6
    %v1533 = vperm.slane %v1101, 7
    %1534 = vst [vmem:[#allocation1] ss:$9 sm:$0xff] %v1150
    %s1535 = scalar_lea.vmem [#allocation1], 1
    %1536 = vst [vmem:[%s1535] ss:$9 sm:$0xff] %v1151
    %s1537 = scalar_lea.vmem [#allocation1], 2
    %1538 = vst [vmem:[%s1537] ss:$9 sm:$0xff] %v1152
    %s1539 = scalar_lea.vmem [#allocation1], 3
    %1540 = vst [vmem:[%s1539] ss:$9 sm:$0xff] %v1153
    %s1541 = scalar_lea.vmem [#allocation1], 4
    %1542 = vst [vmem:[%s1541] ss:$9 sm:$0xff] %v1154
    %s1543 = scalar_lea.vmem [#allocation1], 5
    %1544 = vst [vmem:[%s1543] ss:$9 sm:$0xff] %v1155
    %s1545 = scalar_lea.vmem [#allocation1], 6
    %1546 = vst [vmem:[%s1545] ss:$9 sm:$0xff] %v1156
    %s1547 = scalar_lea.vmem [#allocation1], 7
    %1548 = vst [vmem:[%s1547] ss:$9 sm:$0xff] %v1157
    %v1549 = vld [vmem:[#allocation1] sm:$0xff]
    %1550 = vst [vmem:[#allocation1] ss:$9 sm:$0xff] %v1158
    %1551 = vst [vmem:[%s1535] ss:$9 sm:$0xff] %v1159
    %1552 = vst [vmem:[%s1537] ss:$9 sm:$0xff] %v1160
    %1553 = vst [vmem:[%s1539] ss:$9 sm:$0xff] %v1161
    %1554 = vst [vmem:[%s1541] ss:$9 sm:$0xff] %v1162
    %1555 = vst [vmem:[%s1543] ss:$9 sm:$0xff] %v1163
    %1556 = vst [vmem:[%s1545] ss:$9 sm:$0xff] %v1164
    %1557 = vst [vmem:[%s1547] ss:$9 sm:$0xff] %v1165
    %v1558 = vld [vmem:[#allocation1] sm:$0xff]
    %1559 = vst [vmem:[#allocation1] ss:$9 sm:$0xff] %v1166
    %1560 = vst [vmem:[%s1535] ss:$9 sm:$0xff] %v1167
    %1561 = vst [vmem:[%s1537] ss:$9 sm:$0xff] %v1168
    %1562 = vst [vmem:[%s1539] ss:$9 sm:$0xff] %v1169
    %1563 = vst [vmem:[%s1541] ss:$9 sm:$0xff] %v1170
    %1564 = vst [vmem:[%s1543] ss:$9 sm:$0xff] %v1171
    %1565 = vst [vmem:[%s1545] ss:$9 sm:$0xff] %v1172
    %1566 = vst [vmem:[%s1547] ss:$9 sm:$0xff] %v1173
    %v1567 = vld [vmem:[#allocation1] sm:$0xff]
    %1568 = vst [vmem:[#allocation1] ss:$9 sm:$0xff] %v1174
    %1569 = vst [vmem:[%s1535] ss:$9 sm:$0xff] %v1175
    %1570 = vst [vmem:[%s1537] ss:$9 sm:$0xff] %v1176
    %1571 = vst [vmem:[%s1539] ss:$9 sm:$0xff] %v1177
    %1572 = vst [vmem:[%s1541] ss:$9 sm:$0xff] %v1178
    %1573 = vst [vmem:[%s1543] ss:$9 sm:$0xff] %v1179
    %1574 = vst [vmem:[%s1545] ss:$9 sm:$0xff] %v1180
    %1575 = vst [vmem:[%s1547] ss:$9 sm:$0xff] %v1181
    %v1576 = vld [vmem:[#allocation1] sm:$0xff]
    %1577 = vst [vmem:[#allocation1] ss:$9 sm:$0xff] %v1182
    %1578 = vst [vmem:[%s1535] ss:$9 sm:$0xff] %v1183
    %1579 = vst [vmem:[%s1537] ss:$9 sm:$0xff] %v1184
    %1580 = vst [vmem:[%s1539] ss:$9 sm:$0xff] %v1185
    %1581 = vst [vmem:[%s1541] ss:$9 sm:$0xff] %v1186
    %1582 = vst [vmem:[%s1543] ss:$9 sm:$0xff] %v1187
    %1583 = vst [vmem:[%s1545] ss:$9 sm:$0xff] %v1188
    %1584 = vst [vmem:[%s1547] ss:$9 sm:$0xff] %v1189
    %v1585 = vld [vmem:[#allocation1] sm:$0xff]
    %1586 = vst [vmem:[#allocation1] ss:$9 sm:$0xff] %v1190
    %1587 = vst [vmem:[%s1535] ss:$9 sm:$0xff] %v1191
    %1588 = vst [vmem:[%s1537] ss:$9 sm:$0xff] %v1192
    %1589 = vst [vmem:[%s1539] ss:$9 sm:$0xff] %v1193
    %1590 = vst [vmem:[%s1541] ss:$9 sm:$0xff] %v1194
    %1591 = vst [vmem:[%s1543] ss:$9 sm:$0xff] %v1195
    %1592 = vst [vmem:[%s1545] ss:$9 sm:$0xff] %v1196
    %1593 = vst [vmem:[%s1547] ss:$9 sm:$0xff] %v1197
    %v1594 = vld [vmem:[#allocation1] sm:$0xff]
    %1595 = vst [vmem:[#allocation1] ss:$9 sm:$0xff] %v1198
    %1596 = vst [vmem:[%s1535] ss:$9 sm:$0xff] %v1199
    %1597 = vst [vmem:[%s1537] ss:$9 sm:$0xff] %v1200
    %1598 = vst [vmem:[%s1539] ss:$9 sm:$0xff] %v1201
    %1599 = vst [vmem:[%s1541] ss:$9 sm:$0xff] %v1202
    %1600 = vst [vmem:[%s1543] ss:$9 sm:$0xff] %v1203
    %1601 = vst [vmem:[%s1545] ss:$9 sm:$0xff] %v1204
    %1602 = vst [vmem:[%s1547] ss:$9 sm:$0xff] %v1205
    %v1603 = vld [vmem:[#allocation1] sm:$0xff]
    %1604 = vst [vmem:[#allocation1] ss:$9 sm:$0xff] %v1206
    %1605 = vst [vmem:[%s1535] ss:$9 sm:$0xff] %v1207
    %1606 = vst [vmem:[%s1537] ss:$9 sm:$0xff] %v1208
    %1607 = vst [vmem:[%s1539] ss:$9 sm:$0xff] %v1209
    %1608 = vst [vmem:[%s1541] ss:$9 sm:$0xff] %v1210
    %1609 = vst [vmem:[%s1543] ss:$9 sm:$0xff] %v1211
    %1610 = vst [vmem:[%s1545] ss:$9 sm:$0xff] %v1212
    %1611 = vst [vmem:[%s1547] ss:$9 sm:$0xff] %v1213
    %v1612 = vld [vmem:[#allocation1] sm:$0xff]
    %1613 = vst [vmem:[#allocation1] ss:$9 sm:$0xff] %v1214
    %1614 = vst [vmem:[%s1535] ss:$9 sm:$0xff] %v1215
    %1615 = vst [vmem:[%s1537] ss:$9 sm:$0xff] %v1216
    %1616 = vst [vmem:[%s1539] ss:$9 sm:$0xff] %v1217
    %1617 = vst [vmem:[%s1541] ss:$9 sm:$0xff] %v1218
    %1618 = vst [vmem:[%s1543] ss:$9 sm:$0xff] %v1219
    %1619 = vst [vmem:[%s1545] ss:$9 sm:$0xff] %v1220
    %1620 = vst [vmem:[%s1547] ss:$9 sm:$0xff] %v1221
    %v1621 = vld [vmem:[#allocation1] sm:$0xff]
    %1622 = vst [vmem:[#allocation1] ss:$9 sm:$0xff] %v1222
    %1623 = vst [vmem:[%s1535] ss:$9 sm:$0xff] %v1223
    %1624 = vst [vmem:[%s1537] ss:$9 sm:$0xff] %v1224
    %1625 = vst [vmem:[%s1539] ss:$9 sm:$0xff] %v1225
    %1626 = vst [vmem:[%s1541] ss:$9 sm:$0xff] %v1226
    %1627 = vst [vmem:[%s1543] ss:$9 sm:$0xff] %v1227
    %1628 = vst [vmem:[%s1545] ss:$9 sm:$0xff] %v1228
    %1629 = vst [vmem:[%s1547] ss:$9 sm:$0xff] %v1229
    %v1630 = vld [vmem:[#allocation1] sm:$0xff]
    %1631 = vst [vmem:[#allocation1] ss:$9 sm:$0xff] %v1230
    %1632 = vst [vmem:[%s1535] ss:$9 sm:$0xff] %v1231
    %1633 = vst [vmem:[%s1537] ss:$9 sm:$0xff] %v1232
    %1634 = vst [vmem:[%s1539] ss:$9 sm:$0xff] %v1233
    %1635 = vst [vmem:[%s1541] ss:$9 sm:$0xff] %v1234
    %1636 = vst [vmem:[%s1543] ss:$9 sm:$0xff] %v1235
    %1637 = vst [vmem:[%s1545] ss:$9 sm:$0xff] %v1236
    %1638 = vst [vmem:[%s1547] ss:$9 sm:$0xff] %v1237
    %v1639 = vld [vmem:[#allocation1] sm:$0xff]
    %1640 = vst [vmem:[#allocation1] ss:$9 sm:$0xff] %v1238
    %1641 = vst [vmem:[%s1535] ss:$9 sm:$0xff] %v1239
    %1642 = vst [vmem:[%s1537] ss:$9 sm:$0xff] %v1240
    %1643 = vst [vmem:[%s1539] ss:$9 sm:$0xff] %v1241
    %1644 = vst [vmem:[%s1541] ss:$9 sm:$0xff] %v1242
    %1645 = vst [vmem:[%s1543] ss:$9 sm:$0xff] %v1243
    %1646 = vst [vmem:[%s1545] ss:$9 sm:$0xff] %v1244
    %1647 = vst [vmem:[%s1547] ss:$9 sm:$0xff] %v1245
    %v1648 = vld [vmem:[#allocation1] sm:$0xff]
    %1649 = vst [vmem:[#allocation1] ss:$9 sm:$0xff] %v1246
    %1650 = vst [vmem:[%s1535] ss:$9 sm:$0xff] %v1247
    %1651 = vst [vmem:[%s1537] ss:$9 sm:$0xff] %v1248
    %1652 = vst [vmem:[%s1539] ss:$9 sm:$0xff] %v1249
    %1653 = vst [vmem:[%s1541] ss:$9 sm:$0xff] %v1250
    %1654 = vst [vmem:[%s1543] ss:$9 sm:$0xff] %v1251
    %1655 = vst [vmem:[%s1545] ss:$9 sm:$0xff] %v1252
    %1656 = vst [vmem:[%s1547] ss:$9 sm:$0xff] %v1253
    %v1657 = vld [vmem:[#allocation1] sm:$0xff]
    %1658 = vst [vmem:[#allocation1] ss:$9 sm:$0xff] %v1254
    %1659 = vst [vmem:[%s1535] ss:$9 sm:$0xff] %v1255
    %1660 = vst [vmem:[%s1537] ss:$9 sm:$0xff] %v1256
    %1661 = vst [vmem:[%s1539] ss:$9 sm:$0xff] %v1257
    %1662 = vst [vmem:[%s1541] ss:$9 sm:$0xff] %v1258
    %1663 = vst [vmem:[%s1543] ss:$9 sm:$0xff] %v1259
    %1664 = vst [vmem:[%s1545] ss:$9 sm:$0xff] %v1260
    %1665 = vst [vmem:[%s1547] ss:$9 sm:$0xff] %v1261
    %v1666 = vld [vmem:[#allocation1] sm:$0xff]
    %1667 = vst [vmem:[#allocation1] ss:$9 sm:$0xff] %v1262
    %1668 = vst [vmem:[%s1535] ss:$9 sm:$0xff] %v1263
    %1669 = vst [vmem:[%s1537] ss:$9 sm:$0xff] %v1264
    %1670 = vst [vmem:[%s1539] ss:$9 sm:$0xff] %v1265
    %1671 = vst [vmem:[%s1541] ss:$9 sm:$0xff] %v1266
    %1672 = vst [vmem:[%s1543] ss:$9 sm:$0xff] %v1267
    %1673 = vst [vmem:[%s1545] ss:$9 sm:$0xff] %v1268
    %1674 = vst [vmem:[%s1547] ss:$9 sm:$0xff] %v1269
    %v1675 = vld [vmem:[#allocation1] sm:$0xff]
    %1676 = vst [vmem:[#allocation1] ss:$9 sm:$0xff] %v1270
    %1677 = vst [vmem:[%s1535] ss:$9 sm:$0xff] %v1271
    %1678 = vst [vmem:[%s1537] ss:$9 sm:$0xff] %v1272
    %1679 = vst [vmem:[%s1539] ss:$9 sm:$0xff] %v1273
    %1680 = vst [vmem:[%s1541] ss:$9 sm:$0xff] %v1274
    %1681 = vst [vmem:[%s1543] ss:$9 sm:$0xff] %v1275
    %1682 = vst [vmem:[%s1545] ss:$9 sm:$0xff] %v1276
    %1683 = vst [vmem:[%s1547] ss:$9 sm:$0xff] %v1277
    %v1684 = vld [vmem:[#allocation1] sm:$0xff]
    %1685 = vst [vmem:[#allocation1] ss:$9 sm:$0xff] %v1278
    %1686 = vst [vmem:[%s1535] ss:$9 sm:$0xff] %v1279
    %1687 = vst [vmem:[%s1537] ss:$9 sm:$0xff] %v1280
    %1688 = vst [vmem:[%s1539] ss:$9 sm:$0xff] %v1281
    %1689 = vst [vmem:[%s1541] ss:$9 sm:$0xff] %v1282
    %1690 = vst [vmem:[%s1543] ss:$9 sm:$0xff] %v1283
    %1691 = vst [vmem:[%s1545] ss:$9 sm:$0xff] %v1284
    %1692 = vst [vmem:[%s1547] ss:$9 sm:$0xff] %v1285
    %v1693 = vld [vmem:[#allocation1] sm:$0xff]
    %1694 = vst [vmem:[#allocation1] ss:$9 sm:$0xff] %v1286
    %1695 = vst [vmem:[%s1535] ss:$9 sm:$0xff] %v1287
    %1696 = vst [vmem:[%s1537] ss:$9 sm:$0xff] %v1288
    %1697 = vst [vmem:[%s1539] ss:$9 sm:$0xff] %v1289
    %1698 = vst [vmem:[%s1541] ss:$9 sm:$0xff] %v1290
    %1699 = vst [vmem:[%s1543] ss:$9 sm:$0xff] %v1291
    %1700 = vst [vmem:[%s1545] ss:$9 sm:$0xff] %v1292
    %1701 = vst [vmem:[%s1547] ss:$9 sm:$0xff] %v1293
    %v1702 = vld [vmem:[#allocation1] sm:$0xff]
    %1703 = vst [vmem:[#allocation1] ss:$9 sm:$0xff] %v1294
    %1704 = vst [vmem:[%s1535] ss:$9 sm:$0xff] %v1295
    %1705 = vst [vmem:[%s1537] ss:$9 sm:$0xff] %v1296
    %1706 = vst [vmem:[%s1539] ss:$9 sm:$0xff] %v1297
    %1707 = vst [vmem:[%s1541] ss:$9 sm:$0xff] %v1298
    %1708 = vst [vmem:[%s1543] ss:$9 sm:$0xff] %v1299
    %1709 = vst [vmem:[%s1545] ss:$9 sm:$0xff] %v1300
    %1710 = vst [vmem:[%s1547] ss:$9 sm:$0xff] %v1301
    %v1711 = vld [vmem:[#allocation1] sm:$0xff]
    %1712 = vst [vmem:[#allocation1] ss:$9 sm:$0xff] %v1302
    %1713 = vst [vmem:[%s1535] ss:$9 sm:$0xff] %v1303
    %1714 = vst [vmem:[%s1537] ss:$9 sm:$0xff] %v1304
    %1715 = vst [vmem:[%s1539] ss:$9 sm:$0xff] %v1305
    %1716 = vst [vmem:[%s1541] ss:$9 sm:$0xff] %v1306
    %1717 = vst [vmem:[%s1543] ss:$9 sm:$0xff] %v1307
    %1718 = vst [vmem:[%s1545] ss:$9 sm:$0xff] %v1308
    %1719 = vst [vmem:[%s1547] ss:$9 sm:$0xff] %v1309
    %v1720 = vld [vmem:[#allocation1] sm:$0xff]
    %1721 = vst [vmem:[#allocation1] ss:$9 sm:$0xff] %v1310
    %1722 = vst [vmem:[%s1535] ss:$9 sm:$0xff] %v1311
    %1723 = vst [vmem:[%s1537] ss:$9 sm:$0xff] %v1312
    %1724 = vst [vmem:[%s1539] ss:$9 sm:$0xff] %v1313
    %1725 = vst [vmem:[%s1541] ss:$9 sm:$0xff] %v1314
    %1726 = vst [vmem:[%s1543] ss:$9 sm:$0xff] %v1315
    %1727 = vst [vmem:[%s1545] ss:$9 sm:$0xff] %v1316
    %1728 = vst [vmem:[%s1547] ss:$9 sm:$0xff] %v1317
    %v1729 = vld [vmem:[#allocation1] sm:$0xff]
    %1730 = vst [vmem:[#allocation1] ss:$9 sm:$0xff] %v1318
    %1731 = vst [vmem:[%s1535] ss:$9 sm:$0xff] %v1319
    %1732 = vst [vmem:[%s1537] ss:$9 sm:$0xff] %v1320
    %1733 = vst [vmem:[%s1539] ss:$9 sm:$0xff] %v1321
    %1734 = vst [vmem:[%s1541] ss:$9 sm:$0xff] %v1322
    %1735 = vst [vmem:[%s1543] ss:$9 sm:$0xff] %v1323
    %1736 = vst [vmem:[%s1545] ss:$9 sm:$0xff] %v1324
    %1737 = vst [vmem:[%s1547] ss:$9 sm:$0xff] %v1325
    %v1738 = vld [vmem:[#allocation1] sm:$0xff]
    %1739 = vst [vmem:[#allocation1] ss:$9 sm:$0xff] %v1326
    %1740 = vst [vmem:[%s1535] ss:$9 sm:$0xff] %v1327
    %1741 = vst [vmem:[%s1537] ss:$9 sm:$0xff] %v1328
    %1742 = vst [vmem:[%s1539] ss:$9 sm:$0xff] %v1329
    %1743 = vst [vmem:[%s1541] ss:$9 sm:$0xff] %v1330
    %1744 = vst [vmem:[%s1543] ss:$9 sm:$0xff] %v1331
    %1745 = vst [vmem:[%s1545] ss:$9 sm:$0xff] %v1332
    %1746 = vst [vmem:[%s1547] ss:$9 sm:$0xff] %v1333
    %v1747 = vld [vmem:[#allocation1] sm:$0xff]
    %1748 = vst [vmem:[#allocation1] ss:$9 sm:$0xff] %v1334
    %1749 = vst [vmem:[%s1535] ss:$9 sm:$0xff] %v1335
    %1750 = vst [vmem:[%s1537] ss:$9 sm:$0xff] %v1336
    %1751 = vst [vmem:[%s1539] ss:$9 sm:$0xff] %v1337
    %1752 = vst [vmem:[%s1541] ss:$9 sm:$0xff] %v1338
    %1753 = vst [vmem:[%s1543] ss:$9 sm:$0xff] %v1339
    %1754 = vst [vmem:[%s1545] ss:$9 sm:$0xff] %v1340
    %1755 = vst [vmem:[%s1547] ss:$9 sm:$0xff] %v1341
    %v1756 = vld [vmem:[#allocation1] sm:$0xff]
    %1757 = vst [vmem:[#allocation1] ss:$9 sm:$0xff] %v1342
    %1758 = vst [vmem:[%s1535] ss:$9 sm:$0xff] %v1343
    %1759 = vst [vmem:[%s1537] ss:$9 sm:$0xff] %v1344
    %1760 = vst [vmem:[%s1539] ss:$9 sm:$0xff] %v1345
    %1761 = vst [vmem:[%s1541] ss:$9 sm:$0xff] %v1346
    %1762 = vst [vmem:[%s1543] ss:$9 sm:$0xff] %v1347
    %1763 = vst [vmem:[%s1545] ss:$9 sm:$0xff] %v1348
    %1764 = vst [vmem:[%s1547] ss:$9 sm:$0xff] %v1349
    %v1765 = vld [vmem:[#allocation1] sm:$0xff]
    %1766 = vst [vmem:[#allocation1] ss:$9 sm:$0xff] %v1350
    %1767 = vst [vmem:[%s1535] ss:$9 sm:$0xff] %v1351
    %1768 = vst [vmem:[%s1537] ss:$9 sm:$0xff] %v1352
    %1769 = vst [vmem:[%s1539] ss:$9 sm:$0xff] %v1353
    %1770 = vst [vmem:[%s1541] ss:$9 sm:$0xff] %v1354
    %1771 = vst [vmem:[%s1543] ss:$9 sm:$0xff] %v1355
    %1772 = vst [vmem:[%s1545] ss:$9 sm:$0xff] %v1356
    %1773 = vst [vmem:[%s1547] ss:$9 sm:$0xff] %v1357
    %v1774 = vld [vmem:[#allocation1] sm:$0xff]
    %1775 = vst [vmem:[#allocation1] ss:$9 sm:$0xff] %v1358
    %1776 = vst [vmem:[%s1535] ss:$9 sm:$0xff] %v1359
    %1777 = vst [vmem:[%s1537] ss:$9 sm:$0xff] %v1360
    %1778 = vst [vmem:[%s1539] ss:$9 sm:$0xff] %v1361
    %1779 = vst [vmem:[%s1541] ss:$9 sm:$0xff] %v1362
    %1780 = vst [vmem:[%s1543] ss:$9 sm:$0xff] %v1363
    %1781 = vst [vmem:[%s1545] ss:$9 sm:$0xff] %v1364
    %1782 = vst [vmem:[%s1547] ss:$9 sm:$0xff] %v1365
    %v1783 = vld [vmem:[#allocation1] sm:$0xff]
    %1784 = vst [vmem:[#allocation1] ss:$9 sm:$0xff] %v1366
    %1785 = vst [vmem:[%s1535] ss:$9 sm:$0xff] %v1367
    %1786 = vst [vmem:[%s1537] ss:$9 sm:$0xff] %v1368
    %1787 = vst [vmem:[%s1539] ss:$9 sm:$0xff] %v1369
    %1788 = vst [vmem:[%s1541] ss:$9 sm:$0xff] %v1370
    %1789 = vst [vmem:[%s1543] ss:$9 sm:$0xff] %v1371
    %1790 = vst [vmem:[%s1545] ss:$9 sm:$0xff] %v1372
    %1791 = vst [vmem:[%s1547] ss:$9 sm:$0xff] %v1373
    %v1792 = vld [vmem:[#allocation1] sm:$0xff]
    %1793 = vst [vmem:[#allocation1] ss:$9 sm:$0xff] %v1374
    %1794 = vst [vmem:[%s1535] ss:$9 sm:$0xff] %v1375
    %1795 = vst [vmem:[%s1537] ss:$9 sm:$0xff] %v1376
    %1796 = vst [vmem:[%s1539] ss:$9 sm:$0xff] %v1377
    %1797 = vst [vmem:[%s1541] ss:$9 sm:$0xff] %v1378
    %1798 = vst [vmem:[%s1543] ss:$9 sm:$0xff] %v1379
    %1799 = vst [vmem:[%s1545] ss:$9 sm:$0xff] %v1380
    %1800 = vst [vmem:[%s1547] ss:$9 sm:$0xff] %v1381
    %v1801 = vld [vmem:[#allocation1] sm:$0xff]
    %1802 = vst [vmem:[#allocation1] ss:$9 sm:$0xff] %v1382
    %1803 = vst [vmem:[%s1535] ss:$9 sm:$0xff] %v1383
    %1804 = vst [vmem:[%s1537] ss:$9 sm:$0xff] %v1384
    %1805 = vst [vmem:[%s1539] ss:$9 sm:$0xff] %v1385
    %1806 = vst [vmem:[%s1541] ss:$9 sm:$0xff] %v1386
    %1807 = vst [vmem:[%s1543] ss:$9 sm:$0xff] %v1387
    %1808 = vst [vmem:[%s1545] ss:$9 sm:$0xff] %v1388
    %1809 = vst [vmem:[%s1547] ss:$9 sm:$0xff] %v1389
    %v1810 = vld [vmem:[#allocation1] sm:$0xff]
    %1811 = vst [vmem:[#allocation1] ss:$9 sm:$0xff] %v1390
    %1812 = vst [vmem:[%s1535] ss:$9 sm:$0xff] %v1391
    %1813 = vst [vmem:[%s1537] ss:$9 sm:$0xff] %v1392
    %1814 = vst [vmem:[%s1539] ss:$9 sm:$0xff] %v1393
    %1815 = vst [vmem:[%s1541] ss:$9 sm:$0xff] %v1394
    %1816 = vst [vmem:[%s1543] ss:$9 sm:$0xff] %v1395
    %1817 = vst [vmem:[%s1545] ss:$9 sm:$0xff] %v1396
    %1818 = vst [vmem:[%s1547] ss:$9 sm:$0xff] %v1397
    %v1819 = vld [vmem:[#allocation1] sm:$0xff]
    %1820 = vst [vmem:[#allocation1] ss:$9 sm:$0xff] %v1398
    %1821 = vst [vmem:[%s1535] ss:$9 sm:$0xff] %v1399
    %1822 = vst [vmem:[%s1537] ss:$9 sm:$0xff] %v1400
    %1823 = vst [vmem:[%s1539] ss:$9 sm:$0xff] %v1401
    %1824 = vst [vmem:[%s1541] ss:$9 sm:$0xff] %v1402
    %1825 = vst [vmem:[%s1543] ss:$9 sm:$0xff] %v1403
    %1826 = vst [vmem:[%s1545] ss:$9 sm:$0xff] %v1404
    %1827 = vst [vmem:[%s1547] ss:$9 sm:$0xff] %v1405
    %v1828 = vld [vmem:[#allocation1] sm:$0xff]
    %1829 = vst [vmem:[#allocation1] ss:$9 sm:$0xff] %v1406
    %1830 = vst [vmem:[%s1535] ss:$9 sm:$0xff] %v1407
    %1831 = vst [vmem:[%s1537] ss:$9 sm:$0xff] %v1408
    %1832 = vst [vmem:[%s1539] ss:$9 sm:$0xff] %v1409
    %1833 = vst [vmem:[%s1541] ss:$9 sm:$0xff] %v1410
    %1834 = vst [vmem:[%s1543] ss:$9 sm:$0xff] %v1411
    %1835 = vst [vmem:[%s1545] ss:$9 sm:$0xff] %v1412
    %1836 = vst [vmem:[%s1547] ss:$9 sm:$0xff] %v1413
    %v1837 = vld [vmem:[#allocation1] sm:$0xff]
    %1838 = vst [vmem:[#allocation1] ss:$9 sm:$0xff] %v1414
    %1839 = vst [vmem:[%s1535] ss:$9 sm:$0xff] %v1415
    %1840 = vst [vmem:[%s1537] ss:$9 sm:$0xff] %v1416
    %1841 = vst [vmem:[%s1539] ss:$9 sm:$0xff] %v1417
    %1842 = vst [vmem:[%s1541] ss:$9 sm:$0xff] %v1418
    %1843 = vst [vmem:[%s1543] ss:$9 sm:$0xff] %v1419
    %1844 = vst [vmem:[%s1545] ss:$9 sm:$0xff] %v1420
    %1845 = vst [vmem:[%s1547] ss:$9 sm:$0xff] %v1421
    %v1846 = vld [vmem:[#allocation1] sm:$0xff]
    %1847 = vst [vmem:[#allocation1] ss:$9 sm:$0xff] %v1422
    %1848 = vst [vmem:[%s1535] ss:$9 sm:$0xff] %v1423
    %1849 = vst [vmem:[%s1537] ss:$9 sm:$0xff] %v1424
    %1850 = vst [vmem:[%s1539] ss:$9 sm:$0xff] %v1425
    %1851 = vst [vmem:[%s1541] ss:$9 sm:$0xff] %v1426
    %1852 = vst [vmem:[%s1543] ss:$9 sm:$0xff] %v1427
    %1853 = vst [vmem:[%s1545] ss:$9 sm:$0xff] %v1428
    %1854 = vst [vmem:[%s1547] ss:$9 sm:$0xff] %v1429
    %v1855 = vld [vmem:[#allocation1] sm:$0xff]
    %1856 = vst [vmem:[#allocation1] ss:$9 sm:$0xff] %v1430
    %1857 = vst [vmem:[%s1535] ss:$9 sm:$0xff] %v1431
    %1858 = vst [vmem:[%s1537] ss:$9 sm:$0xff] %v1432
    %1859 = vst [vmem:[%s1539] ss:$9 sm:$0xff] %v1433
    %1860 = vst [vmem:[%s1541] ss:$9 sm:$0xff] %v1434
    %1861 = vst [vmem:[%s1543] ss:$9 sm:$0xff] %v1435
    %1862 = vst [vmem:[%s1545] ss:$9 sm:$0xff] %v1436
    %1863 = vst [vmem:[%s1547] ss:$9 sm:$0xff] %v1437
    %v1864 = vld [vmem:[#allocation1] sm:$0xff]
    %1865 = vst [vmem:[#allocation1] ss:$9 sm:$0xff] %v1438
    %1866 = vst [vmem:[%s1535] ss:$9 sm:$0xff] %v1439
    %1867 = vst [vmem:[%s1537] ss:$9 sm:$0xff] %v1440
    %1868 = vst [vmem:[%s1539] ss:$9 sm:$0xff] %v1441
    %1869 = vst [vmem:[%s1541] ss:$9 sm:$0xff] %v1442
    %1870 = vst [vmem:[%s1543] ss:$9 sm:$0xff] %v1443
    %1871 = vst [vmem:[%s1545] ss:$9 sm:$0xff] %v1444
    %1872 = vst [vmem:[%s1547] ss:$9 sm:$0xff] %v1445
    %v1873 = vld [vmem:[#allocation1] sm:$0xff]
    %1874 = vst [vmem:[#allocation1] ss:$9 sm:$0xff] %v1446
    %1875 = vst [vmem:[%s1535] ss:$9 sm:$0xff] %v1447
    %1876 = vst [vmem:[%s1537] ss:$9 sm:$0xff] %v1448
    %1877 = vst [vmem:[%s1539] ss:$9 sm:$0xff] %v1449
    %1878 = vst [vmem:[%s1541] ss:$9 sm:$0xff] %v1450
    %1879 = vst [vmem:[%s1543] ss:$9 sm:$0xff] %v1451
    %1880 = vst [vmem:[%s1545] ss:$9 sm:$0xff] %v1452
    %1881 = vst [vmem:[%s1547] ss:$9 sm:$0xff] %v1453
    %v1882 = vld [vmem:[#allocation1] sm:$0xff]
    %1883 = vst [vmem:[#allocation1] ss:$9 sm:$0xff] %v1454
    %1884 = vst [vmem:[%s1535] ss:$9 sm:$0xff] %v1455
    %1885 = vst [vmem:[%s1537] ss:$9 sm:$0xff] %v1456
    %1886 = vst [vmem:[%s1539] ss:$9 sm:$0xff] %v1457
    %1887 = vst [vmem:[%s1541] ss:$9 sm:$0xff] %v1458
    %1888 = vst [vmem:[%s1543] ss:$9 sm:$0xff] %v1459
    %1889 = vst [vmem:[%s1545] ss:$9 sm:$0xff] %v1460
    %1890 = vst [vmem:[%s1547] ss:$9 sm:$0xff] %v1461
    %v1891 = vld [vmem:[#allocation1] sm:$0xff]
    %1892 = vst [vmem:[#allocation1] ss:$9 sm:$0xff] %v1462
    %1893 = vst [vmem:[%s1535] ss:$9 sm:$0xff] %v1463
    %1894 = vst [vmem:[%s1537] ss:$9 sm:$0xff] %v1464
    %1895 = vst [vmem:[%s1539] ss:$9 sm:$0xff] %v1465
    %1896 = vst [vmem:[%s1541] ss:$9 sm:$0xff] %v1466
    %1897 = vst [vmem:[%s1543] ss:$9 sm:$0xff] %v1467
    %1898 = vst [vmem:[%s1545] ss:$9 sm:$0xff] %v1468
    %1899 = vst [vmem:[%s1547] ss:$9 sm:$0xff] %v1469
    %v1900 = vld [vmem:[#allocation1] sm:$0xff]
    %1901 = vst [vmem:[#allocation1] ss:$9 sm:$0xff] %v1470
    %1902 = vst [vmem:[%s1535] ss:$9 sm:$0xff] %v1471
    %1903 = vst [vmem:[%s1537] ss:$9 sm:$0xff] %v1472
    %1904 = vst [vmem:[%s1539] ss:$9 sm:$0xff] %v1473
    %1905 = vst [vmem:[%s1541] ss:$9 sm:$0xff] %v1474
    %1906 = vst [vmem:[%s1543] ss:$9 sm:$0xff] %v1475
    %1907 = vst [vmem:[%s1545] ss:$9 sm:$0xff] %v1476
    %1908 = vst [vmem:[%s1547] ss:$9 sm:$0xff] %v1477
    %v1909 = vld [vmem:[#allocation1] sm:$0xff]
    %1910 = vst [vmem:[#allocation1] ss:$9 sm:$0xff] %v1478
    %1911 = vst [vmem:[%s1535] ss:$9 sm:$0xff] %v1479
    %1912 = vst [vmem:[%s1537] ss:$9 sm:$0xff] %v1480
    %1913 = vst [vmem:[%s1539] ss:$9 sm:$0xff] %v1481
    %1914 = vst [vmem:[%s1541] ss:$9 sm:$0xff] %v1482
    %1915 = vst [vmem:[%s1543] ss:$9 sm:$0xff] %v1483
    %1916 = vst [vmem:[%s1545] ss:$9 sm:$0xff] %v1484
    %1917 = vst [vmem:[%s1547] ss:$9 sm:$0xff] %v1485
    %v1918 = vld [vmem:[#allocation1] sm:$0xff]
    %1919 = vst [vmem:[#allocation1] ss:$9 sm:$0xff] %v1486
    %1920 = vst [vmem:[%s1535] ss:$9 sm:$0xff] %v1487
    %1921 = vst [vmem:[%s1537] ss:$9 sm:$0xff] %v1488
    %1922 = vst [vmem:[%s1539] ss:$9 sm:$0xff] %v1489
    %1923 = vst [vmem:[%s1541] ss:$9 sm:$0xff] %v1490
    %1924 = vst [vmem:[%s1543] ss:$9 sm:$0xff] %v1491
    %1925 = vst [vmem:[%s1545] ss:$9 sm:$0xff] %v1492
    %1926 = vst [vmem:[%s1547] ss:$9 sm:$0xff] %v1493
    %v1927 = vld [vmem:[#allocation1] sm:$0xff]
    %1928 = vst [vmem:[#allocation1] ss:$9 sm:$0xff] %v1494
    %1929 = vst [vmem:[%s1535] ss:$9 sm:$0xff] %v1495
    %1930 = vst [vmem:[%s1537] ss:$9 sm:$0xff] %v1496
    %1931 = vst [vmem:[%s1539] ss:$9 sm:$0xff] %v1497
    %1932 = vst [vmem:[%s1541] ss:$9 sm:$0xff] %v1498
    %1933 = vst [vmem:[%s1543] ss:$9 sm:$0xff] %v1499
    %1934 = vst [vmem:[%s1545] ss:$9 sm:$0xff] %v1500
    %1935 = vst [vmem:[%s1547] ss:$9 sm:$0xff] %v1501
    %v1936 = vld [vmem:[#allocation1] sm:$0xff]
    %1937 = vst [vmem:[#allocation1] ss:$9 sm:$0xff] %v1502
    %1938 = vst [vmem:[%s1535] ss:$9 sm:$0xff] %v1503
    %1939 = vst [vmem:[%s1537] ss:$9 sm:$0xff] %v1504
    %1940 = vst [vmem:[%s1539] ss:$9 sm:$0xff] %v1505
    %1941 = vst [vmem:[%s1541] ss:$9 sm:$0xff] %v1506
    %1942 = vst [vmem:[%s1543] ss:$9 sm:$0xff] %v1507
    %1943 = vst [vmem:[%s1545] ss:$9 sm:$0xff] %v1508
    %1944 = vst [vmem:[%s1547] ss:$9 sm:$0xff] %v1509
    %v1945 = vld [vmem:[#allocation1] sm:$0xff]
    %1946 = vst [vmem:[#allocation1] ss:$9 sm:$0xff] %v1510
    %1947 = vst [vmem:[%s1535] ss:$9 sm:$0xff] %v1511
    %1948 = vst [vmem:[%s1537] ss:$9 sm:$0xff] %v1512
    %1949 = vst [vmem:[%s1539] ss:$9 sm:$0xff] %v1513
    %1950 = vst [vmem:[%s1541] ss:$9 sm:$0xff] %v1514
    %1951 = vst [vmem:[%s1543] ss:$9 sm:$0xff] %v1515
    %1952 = vst [vmem:[%s1545] ss:$9 sm:$0xff] %v1516
    %1953 = vst [vmem:[%s1547] ss:$9 sm:$0xff] %v1517
    %v1954 = vld [vmem:[#allocation1] sm:$0xff]
    %1955 = vst [vmem:[#allocation1] ss:$9 sm:$0xff] %v1518
    %1956 = vst [vmem:[%s1535] ss:$9 sm:$0xff] %v1519
    %1957 = vst [vmem:[%s1537] ss:$9 sm:$0xff] %v1520
    %1958 = vst [vmem:[%s1539] ss:$9 sm:$0xff] %v1521
    %1959 = vst [vmem:[%s1541] ss:$9 sm:$0xff] %v1522
    %1960 = vst [vmem:[%s1543] ss:$9 sm:$0xff] %v1523
    %1961 = vst [vmem:[%s1545] ss:$9 sm:$0xff] %v1524
    %1962 = vst [vmem:[%s1547] ss:$9 sm:$0xff] %v1525
    %v1963 = vld [vmem:[#allocation1] sm:$0xff]
    %1964 = vst [vmem:[#allocation1] ss:$9 sm:$0xff] %v1526
    %1965 = vst [vmem:[%s1535] ss:$9 sm:$0xff] %v1527
    %1966 = vst [vmem:[%s1537] ss:$9 sm:$0xff] %v1528
    %1967 = vst [vmem:[%s1539] ss:$9 sm:$0xff] %v1529
    %1968 = vst [vmem:[%s1541] ss:$9 sm:$0xff] %v1530
    %1969 = vst [vmem:[%s1543] ss:$9 sm:$0xff] %v1531
    %1970 = vst [vmem:[%s1545] ss:$9 sm:$0xff] %v1532
    %1971 = vst [vmem:[%s1547] ss:$9 sm:$0xff] %v1533
    %v1972 = vld [vmem:[#allocation1] sm:$0xff]
    %1973 = vset.pattern.permute.xlu0 0
    %1974 = vperm.xlu0 %1973, %v1549
    %v1975 = vpop.permute.xlu0 %1974
    %1976 = vset.pattern.permute.xlu0 0
    %1977 = vperm.xlu0 %1976, %v1558
    %v1978 = vpop.permute.xlu0 %1977
    %1979 = vset.pattern.permute.xlu0 0
    %1980 = vperm.xlu0 %1979, %v1567
    %v1981 = vpop.permute.xlu0 %1980
    %1982 = vset.pattern.permute.xlu0 0
    %1983 = vperm.xlu0 %1982, %v1576
    %v1984 = vpop.permute.xlu0 %1983
    %1985 = vset.pattern.permute.xlu0 0
    %1986 = vperm.xlu0 %1985, %v1585
    %v1987 = vpop.permute.xlu0 %1986
    %1988 = vset.pattern.permute.xlu0 0
    %1989 = vperm.xlu0 %1988, %v1594
    %v1990 = vpop.permute.xlu0 %1989
    %1991 = vset.pattern.permute.xlu0 0
    %1992 = vperm.xlu0 %1991, %v1603
    %v1993 = vpop.permute.xlu0 %1992
    %1994 = vset.pattern.permute.xlu0 0
    %1995 = vperm.xlu0 %1994, %v1612
    %v1996 = vpop.permute.xlu0 %1995
    %1997 = vset.pattern.permute.xlu0 0
    %1998 = vperm.xlu0 %1997, %v1621
    %v1999 = vpop.permute.xlu0 %1998
    %2000 = vset.pattern.permute.xlu0 0
    %2001 = vperm.xlu0 %2000, %v1630
    %v2002 = vpop.permute.xlu0 %2001
    %2003 = vset.pattern.permute.xlu0 0
    %2004 = vperm.xlu0 %2003, %v1639
    %v2005 = vpop.permute.xlu0 %2004
    %2006 = vset.pattern.permute.xlu0 0
    %2007 = vperm.xlu0 %2006, %v1648
    %v2008 = vpop.permute.xlu0 %2007
    %2009 = vset.pattern.permute.xlu0 0
    %2010 = vperm.xlu0 %2009, %v1657
    %v2011 = vpop.permute.xlu0 %2010
    %2012 = vset.pattern.permute.xlu0 0
    %2013 = vperm.xlu0 %2012, %v1666
    %v2014 = vpop.permute.xlu0 %2013
    %2015 = vset.pattern.permute.xlu0 0
    %2016 = vperm.xlu0 %2015, %v1675
    %v2017 = vpop.permute.xlu0 %2016
    %2018 = vset.pattern.permute.xlu0 0
    %2019 = vperm.xlu0 %2018, %v1684
    %v2020 = vpop.permute.xlu0 %2019
    %2021 = vset.pattern.permute.xlu0 0
    %2022 = vperm.xlu0 %2021, %v1693
    %v2023 = vpop.permute.xlu0 %2022
    %2024 = vset.pattern.permute.xlu0 0
    %2025 = vperm.xlu0 %2024, %v1702
    %v2026 = vpop.permute.xlu0 %2025
    %2027 = vset.pattern.permute.xlu0 0
    %2028 = vperm.xlu0 %2027, %v1711
    %v2029 = vpop.permute.xlu0 %2028
    %2030 = vset.pattern.permute.xlu0 0
    %2031 = vperm.xlu0 %2030, %v1720
    %v2032 = vpop.permute.xlu0 %2031
    %2033 = vset.pattern.permute.xlu0 0
    %2034 = vperm.xlu0 %2033, %v1729
    %v2035 = vpop.permute.xlu0 %2034
    %2036 = vset.pattern.permute.xlu0 0
    %2037 = vperm.xlu0 %2036, %v1738
    %v2038 = vpop.permute.xlu0 %2037
    %2039 = vset.pattern.permute.xlu0 0
    %2040 = vperm.xlu0 %2039, %v1747
    %v2041 = vpop.permute.xlu0 %2040
    %2042 = vset.pattern.permute.xlu0 0
    %2043 = vperm.xlu0 %2042, %v1756
    %v2044 = vpop.permute.xlu0 %2043
    %2045 = vset.pattern.permute.xlu0 0
    %2046 = vperm.xlu0 %2045, %v1765
    %v2047 = vpop.permute.xlu0 %2046
    %2048 = vset.pattern.permute.xlu0 0
    %2049 = vperm.xlu0 %2048, %v1774
    %v2050 = vpop.permute.xlu0 %2049
    %2051 = vset.pattern.permute.xlu0 0
    %2052 = vperm.xlu0 %2051, %v1783
    %v2053 = vpop.permute.xlu0 %2052
    %2054 = vset.pattern.permute.xlu0 0
    %2055 = vperm.xlu0 %2054, %v1792
    %v2056 = vpop.permute.xlu0 %2055
    %2057 = vset.pattern.permute.xlu0 0
    %2058 = vperm.xlu0 %2057, %v1801
    %v2059 = vpop.permute.xlu0 %2058
    %2060 = vset.pattern.permute.xlu0 0
    %2061 = vperm.xlu0 %2060, %v1810
    %v2062 = vpop.permute.xlu0 %2061
    %2063 = vset.pattern.permute.xlu0 0
    %2064 = vperm.xlu0 %2063, %v1819
    %v2065 = vpop.permute.xlu0 %2064
    %2066 = vset.pattern.permute.xlu0 0
    %2067 = vperm.xlu0 %2066, %v1828
    %v2068 = vpop.permute.xlu0 %2067
    %2069 = vset.pattern.permute.xlu0 0
    %2070 = vperm.xlu0 %2069, %v1837
    %v2071 = vpop.permute.xlu0 %2070
    %2072 = vset.pattern.permute.xlu0 0
    %2073 = vperm.xlu0 %2072, %v1846
    %v2074 = vpop.permute.xlu0 %2073
    %2075 = vset.pattern.permute.xlu0 0
    %2076 = vperm.xlu0 %2075, %v1855
    %v2077 = vpop.permute.xlu0 %2076
    %2078 = vset.pattern.permute.xlu0 0
    %2079 = vperm.xlu0 %2078, %v1864
    %v2080 = vpop.permute.xlu0 %2079
    %2081 = vset.pattern.permute.xlu0 0
    %2082 = vperm.xlu0 %2081, %v1873
    %v2083 = vpop.permute.xlu0 %2082
    %2084 = vset.pattern.permute.xlu0 0
    %2085 = vperm.xlu0 %2084, %v1882
    %v2086 = vpop.permute.xlu0 %2085
    %2087 = vset.pattern.permute.xlu0 0
    %2088 = vperm.xlu0 %2087, %v1891
    %v2089 = vpop.permute.xlu0 %2088
    %2090 = vset.pattern.permute.xlu0 0
    %2091 = vperm.xlu0 %2090, %v1900
    %v2092 = vpop.permute.xlu0 %2091
    %2093 = vset.pattern.permute.xlu0 0
    %2094 = vperm.xlu0 %2093, %v1909
    %v2095 = vpop.permute.xlu0 %2094
    %2096 = vset.pattern.permute.xlu0 0
    %2097 = vperm.xlu0 %2096, %v1918
    %v2098 = vpop.permute.xlu0 %2097
    %2099 = vset.pattern.permute.xlu0 0
    %2100 = vperm.xlu0 %2099, %v1927
    %v2101 = vpop.permute.xlu0 %2100
    %2102 = vset.pattern.permute.xlu0 0
    %2103 = vperm.xlu0 %2102, %v1936
    %v2104 = vpop.permute.xlu0 %2103
    %2105 = vset.pattern.permute.xlu0 0
    %2106 = vperm.xlu0 %2105, %v1945
    %v2107 = vpop.permute.xlu0 %2106
    %2108 = vset.pattern.permute.xlu0 0
    %2109 = vperm.xlu0 %2108, %v1954
    %v2110 = vpop.permute.xlu0 %2109
    %2111 = vset.pattern.permute.xlu0 0
    %2112 = vperm.xlu0 %2111, %v1963
    %v2113 = vpop.permute.xlu0 %2112
    %2114 = vset.pattern.permute.xlu0 0
    %2115 = vperm.xlu0 %2114, %v1972
    %v2116 = vpop.permute.xlu0 %2115
    %v2117 = vlaneseq
    %v2118 = vand.u32 %v2117, 127
    %v2119 = vperm.slane %v1975, %v2118
    %v2120 = vadd.s32 %v2118, 4294967288
    %v2121 = vperm.slane %v1978, %v2120
    %vm2122 = vcmask 130112
    %v2123 = vsel %vm2122, %v2121, %v2119
    %v2124 = vadd.s32 %v2118, 4294967280
    %v2125 = vperm.slane %v1981, %v2124
    %vm2126 = vcmask 195712
    %v2127 = vsel %vm2126, %v2125, %v2123
    %v2128 = vadd.s32 %v2118, 4294967272
    %v2129 = vperm.slane %v1984, %v2128
    %vm2130 = vcmask 261312
    %v2131 = vsel %vm2130, %v2129, %v2127
    %v2132 = vadd.s32 %v2118, 4294967264
    %v2133 = vperm.slane %v1987, %v2132
    %vm2134 = vcmask 326912
    %v2135 = vsel %vm2134, %v2133, %v2131
    %v2136 = vadd.s32 %v2118, 4294967256
    %v2137 = vperm.slane %v1990, %v2136
    %vm2138 = vcmask 392512
    %v2139 = vsel %vm2138, %v2137, %v2135
    %v2140 = vadd.s32 %v2118, 4294967248
    %v2141 = vperm.slane %v1993, %v2140
    %vm2142 = vcmask 458112
    %v2143 = vsel %vm2142, %v2141, %v2139
    %v2144 = vadd.s32 %v2118, 4294967240
    %v2145 = vperm.slane %v1996, %v2144
    %vm2146 = vcmask 523712
    %v2147 = vsel %vm2146, %v2145, %v2143
    %v2148 = vadd.s32 %v2118, 4294967232
    %v2149 = vperm.slane %v1999, %v2148
    %vm2150 = vcmask 589312
    %v2151 = vsel %vm2150, %v2149, %v2147
    %v2152 = vadd.s32 %v2118, 4294967224
    %v2153 = vperm.slane %v2002, %v2152
    %vm2154 = vcmask 654912
    %v2155 = vsel %vm2154, %v2153, %v2151
    %v2156 = vadd.s32 %v2118, 4294967216
    %v2157 = vperm.slane %v2005, %v2156
    %vm2158 = vcmask 720512
    %v2159 = vsel %vm2158, %v2157, %v2155
    %v2160 = vadd.s32 %v2118, 4294967208
    %v2161 = vperm.slane %v2008, %v2160
    %vm2162 = vcmask 786112
    %v2163 = vsel %vm2162, %v2161, %v2159
    %v2164 = vadd.s32 %v2118, 4294967200
    %v2165 = vperm.slane %v2011, %v2164
    %vm2166 = vcmask 851712
    %v2167 = vsel %vm2166, %v2165, %v2163
    %v2168 = vadd.s32 %v2118, 4294967192
    %v2169 = vperm.slane %v2014, %v2168
    %vm2170 = vcmask 917312
    %v2171 = vsel %vm2170, %v2169, %v2167
    %v2172 = vadd.s32 %v2118, 4294967184
    %v2173 = vperm.slane %v2017, %v2172
    %vm2174 = vcmask 982912
    %v2175 = vsel %vm2174, %v2173, %v2171
    %v2176 = vadd.s32 %v2118, 4294967176
    %v2177 = vperm.slane %v2020, %v2176
    %vm2178 = vcmask 1048512
    %v2179 = vsel %vm2178, %v2177, %v2175
    %v2180 = vperm.slane %v2023, %v2118
    %v2181 = vperm.slane %v2026, %v2120
    %v2182 = vsel %vm2122, %v2181, %v2180
    %v2183 = vperm.slane %v2029, %v2124
    %v2184 = vsel %vm2126, %v2183, %v2182
    %v2185 = vperm.slane %v2032, %v2128
    %v2186 = vsel %vm2130, %v2185, %v2184
    %v2187 = vperm.slane %v2035, %v2132
    %v2188 = vsel %vm2134, %v2187, %v2186
    %v2189 = vperm.slane %v2038, %v2136
    %v2190 = vsel %vm2138, %v2189, %v2188
    %v2191 = vperm.slane %v2041, %v2140
    %v2192 = vsel %vm2142, %v2191, %v2190
    %v2193 = vperm.slane %v2044, %v2144
    %v2194 = vsel %vm2146, %v2193, %v2192
    %v2195 = vperm.slane %v2047, %v2148
    %v2196 = vsel %vm2150, %v2195, %v2194
    %v2197 = vperm.slane %v2050, %v2152
    %v2198 = vsel %vm2154, %v2197, %v2196
    %v2199 = vperm.slane %v2053, %v2156
    %v2200 = vsel %vm2158, %v2199, %v2198
    %v2201 = vperm.slane %v2056, %v2160
    %v2202 = vsel %vm2162, %v2201, %v2200
    %v2203 = vperm.slane %v2059, %v2164
    %v2204 = vsel %vm2166, %v2203, %v2202
    %v2205 = vperm.slane %v2062, %v2168
    %v2206 = vsel %vm2170, %v2205, %v2204
    %v2207 = vperm.slane %v2065, %v2172
    %v2208 = vsel %vm2174, %v2207, %v2206
    %v2209 = vperm.slane %v2068, %v2176
    %v2210 = vsel %vm2178, %v2209, %v2208
    %v2211 = vperm.slane %v2071, %v2118
    %v2212 = vperm.slane %v2074, %v2120
    %v2213 = vsel %vm2122, %v2212, %v2211
    %v2214 = vperm.slane %v2077, %v2124
    %v2215 = vsel %vm2126, %v2214, %v2213
    %v2216 = vperm.slane %v2080, %v2128
    %v2217 = vsel %vm2130, %v2216, %v2215
    %v2218 = vperm.slane %v2083, %v2132
    %v2219 = vsel %vm2134, %v2218, %v2217
    %v2220 = vperm.slane %v2086, %v2136
    %v2221 = vsel %vm2138, %v2220, %v2219
    %v2222 = vperm.slane %v2089, %v2140
    %v2223 = vsel %vm2142, %v2222, %v2221
    %v2224 = vperm.slane %v2092, %v2144
    %v2225 = vsel %vm2146, %v2224, %v2223
    %v2226 = vperm.slane %v2095, %v2148
    %v2227 = vsel %vm2150, %v2226, %v2225
    %v2228 = vperm.slane %v2098, %v2152
    %v2229 = vsel %vm2154, %v2228, %v2227
    %v2230 = vperm.slane %v2101, %v2156
    %v2231 = vsel %vm2158, %v2230, %v2229
    %v2232 = vperm.slane %v2104, %v2160
    %v2233 = vsel %vm2162, %v2232, %v2231
    %v2234 = vperm.slane %v2107, %v2164
    %v2235 = vsel %vm2166, %v2234, %v2233
    %v2236 = vperm.slane %v2110, %v2168
    %v2237 = vsel %vm2170, %v2236, %v2235
    %v2238 = vperm.slane %v2113, %v2172
    %v2239 = vsel %vm2174, %v2238, %v2237
    %v2240 = vperm.slane %v2116, %v2176
    %v2241 = vsel %vm2178, %v2240, %v2239
    %v2242 = vrot.slane %v2210, 7
    %v2243 = vrot.slane %v2241, 6
    %vm2244 = vcmask 1040384
    %v2245 = vsel %vm2244, %v2179, %v2242
    %vm2246 = vcmask 1041408
    %v2247 = vsel %vm2246, %v2245, %v2243
    %v2249 = vlaneseq
    %vm2250 = vcmp.ge.s32.totalorder %v2249, 0
    %vm2251 = vcmp.lt.s32.totalorder %v2249, 384
    %vm2252 = vmand %vm2250, %vm2251
    %2253 = vst.msk [vmem:[#allocation3] sm:$0x7] %vm2252, %v2247
    // Predicated region
    $region30: #{tpu_custom_call.1} parent=1 // pred_check
      _
    $region31: #{tpu_custom_call.1} parent=1 // pred_check_branch
      %2255 = sbr.rel (0) target = $region33
    $region32: #{tpu_custom_call.1} parent=1 // pred_region
      %2257 = vsyncadd [#allocation4], 0
      %s2259 = sshll.u32 [#allocation3], 4
      %s2260 = int_to_ptr.vmem [resolvable:$true] %s2259
      %s2261 = sshll.u32 %s7, 4
      %s2262 = int_to_ptr.hbm [resolvable:$true] %s2261
      %2264 = dma.vmem_to_hbm [thread:$0]  %s2260, 48, %s2262, [#allocation4]
    $region33: #{tpu_custom_call.1} parent=1 // pred_fallthru
      _
    // Predicated region
    $region34: #{tpu_custom_call.1} parent=1 // pred_check
      _
    $region35: #{tpu_custom_call.1} parent=1 // pred_check_branch
      %2266 = sbr.rel (0) target = $region37
    $region36: #{tpu_custom_call.1} parent=1 // pred_region
      %2268 = dma.done [#allocation4], 48
    $region37: #{tpu_custom_call.1} parent=1 // pred_fallthru
      _
    %2269 = vsyncpa [#allocation4], 1

</llo_original>
